<compile_context>
chip_gen: v6e
topology: v6e:2x2x1
jax: 0.10.0
libtpu: 0.0.40
codegen_flags: <defaults>
</compile_context>

<pallas_src>
import functools

import jax
import jax.numpy as jnp
from jax import lax
from jax.experimental import pallas as pl
from jax.experimental.pallas import tpu as pltpu

IGNORE_INDEX = 255
# Pixel-tile target: big enough to amortize per-grid-step overhead on v5e/v6e,
# small enough that f32 intermediates stay well inside v7x's 64 MiB VMEM.
TILE_TARGET = 16384


# ------------------------------ fused kernel --------------------------------

def _fused_train_kernel(wi_ref, wj_ref,          # SMEM (B,) per-sample weights
                        xi_ref, xj_ref,          # VMEM (1, C, TP) bf16 images
                        meta_ref,                # VMEM (1, 1, TP) int32 packed
                        w_ref, bias_ref,         # VMEM (2K, C) bf16 / (2K, 1) f32
                        seg_i_ref, seg_j_ref, cps_ref):  # (1,1,1) partial sums
    b = pl.program_id(0)

    xi = xi_ref[0]                       # (C, TP) bf16 (raw, norm folded into w)
    xj = xj_ref[0]                       # (C, TP) bf16
    packed = meta_ref[0]                 # (1, TP) int32
    w = w_ref[...]                       # (2K, C) bf16
    bias = bias_ref[...]                 # (2K, 1) f32

    w_i = wi_ref[b]                      # per-sample scalar weights (SMEM)
    w_j = wj_ref[b]
    w_mix = (w_i + w_j) * 0.5

    # unpack labels / CutMix mask / valid-lane flag (bits 0-8, 9-17, 18, 19)
    ti = packed & 0x1FF                                  # (1, TP) int32
    tj = (packed >> 9) & 0x1FF
    m = ((packed >> 18) & 1).astype(jnp.float32)         # (1, TP) {0,1}
    valid = ((packed >> 19) & 1).astype(jnp.float32)     # 0 on padded lanes

    # One stacked matmul per input yields both branches' logits (rows 0..K-1 =
    # branch one, K..2K-1 = branch two).  The conv is affine and the CutMix mix
    # is convex, so branch(x_mix) == (1-m)*branch(x_i) + m*branch(x_j): the
    # third matmul / x_mix build is replaced by an elementwise mix of logits.
    li = jnp.dot(w, xi, preferred_element_type=jnp.float32) + bias   # (2K, TP)
    lj = jnp.dot(w, xj, preferred_element_type=jnp.float32) + bias
    lm = li + m * (lj - li)

    twoK = li.shape[0]
    K = twoK // 2
    a1_i, a2_i = li[:K], li[K:]
    a1_j, a2_j = lj[:K], lj[K:]
    a1_m, a2_m = lm[:K], lm[K:]

    # hoisted constants (JAX does not CSE broadcast_in_dim)
    kidx = lax.broadcasted_iota(jnp.int32, (K, 1), 0)    # lane-broadcast on use
    ones_row = jnp.ones((1, K), jnp.float32)

    def colsum(x):
        # axis-0 sum offloaded to the (idle) MXU instead of a cross-sublane
        # XLU reduce: (1,K) @ (K,TP) -> (1,TP)
        return jnp.dot(ones_row, x, preferred_element_type=jnp.float32)

    def bmax(a):
        return jnp.max(a, axis=0, keepdims=True)          # (1, TP)

    # per-branch maxima, reused for both pseudo-label argmax and LSE
    mx1_i, mx2_i = bmax(a1_i), bmax(a2_i)
    mx1_j, mx2_j = bmax(a1_j), bmax(a2_j)
    mx1_m, mx2_m = bmax(a1_m), bmax(a2_m)

    # pseudo labels from mixed predictions (torch.argmax first-occurrence ties)
    pseudo1 = jnp.min(jnp.where(a1_m == mx1_m, kidx, K), axis=0, keepdims=True)
    pseudo2 = jnp.min(jnp.where(a2_m == mx2_m, kidx, K), axis=0, keepdims=True)

    def lse_from(mx, a):
        return mx + jnp.log(colsum(jnp.exp(a - mx)))       # (1, TP)

    oh_i = (kidx == ti).astype(jnp.float32)                # (K, TP)
    oh_j = (kidx == tj).astype(jnp.float32)
    oh_p1 = (kidx == pseudo1).astype(jnp.float32)
    oh_p2 = (kidx == pseudo2).astype(jnp.float32)

    # seg terms: both branches share the same labels -> combine the picked sums
    seg_i_pix = (lse_from(mx1_i, a1_i) + lse_from(mx2_i, a2_i)
                 - colsum((a1_i + a2_i) * oh_i))
    seg_i_pix = jnp.where(ti != IGNORE_INDEX, seg_i_pix, 0.0)

    seg_j_pix = (lse_from(mx1_j, a1_j) + lse_from(mx2_j, a2_j)
                 - colsum((a1_j + a2_j) * oh_j))
    seg_j_pix = jnp.where(tj != IGNORE_INDEX, seg_j_pix, 0.0)

    # CPS term: pseudo labels are never IGNORE_INDEX; mask out padded lanes
    cps_pix = (lse_from(mx1_m, a1_m) - colsum(a1_m * oh_p2)
               + lse_from(mx2_m, a2_m) - colsum(a2_m * oh_p1))
    cps_pix = cps_pix * valid

    # per-(b, t) weighted partial sums (distinct output block per grid point)
    seg_i_ref[0] = jnp.sum(seg_i_pix, axis=1, keepdims=True) * w_i
    seg_j_ref[0] = jnp.sum(seg_j_pix, axis=1, keepdims=True) * w_j
    cps_ref[0] = jnp.sum(cps_pix, axis=1, keepdims=True) * w_mix


# ------------------------------ pallas wrapper -------------------------------

def _round_up(x, m):
    return (x + m - 1) // m * m


def fused_forward_train(x_i, x_j, packed_meta, wi, wj, w_stacked, b_stacked, tp):
    B, C, P_pad = x_i.shape
    twoK = w_stacked.shape[0]
    T = P_pad // tp

    out_part = jax.ShapeDtypeStruct((B * T, 1, 1), jnp.float32)
    out_spec = pl.BlockSpec((1, 1, 1), lambda b, t, T=T: (b * T + t, 0, 0))
    return pl.pallas_call(
        _fused_train_kernel,
        grid=(B, T),
        in_specs=[
            pl.BlockSpec(memory_space=pltpu.MemorySpace.SMEM),   # wi (B,)
            pl.BlockSpec(memory_space=pltpu.MemorySpace.SMEM),   # wj (B,)
            pl.BlockSpec((1, C, tp), lambda b, t: (b, 0, t)),    # x_i (bf16)
            pl.BlockSpec((1, C, tp), lambda b, t: (b, 0, t)),    # x_j (bf16)
            pl.BlockSpec((1, 1, tp), lambda b, t: (b, 0, t)),    # packed meta
            pl.BlockSpec((twoK, C), lambda b, t: (0, 0)),        # stacked weights
            pl.BlockSpec((twoK, 1), lambda b, t: (0, 0)),        # stacked bias
        ],
        out_specs=(out_spec, out_spec, out_spec),
        out_shape=(out_part, out_part, out_part),
        compiler_params=pltpu.CompilerParams(
            # per-(b,t) partial outputs => no accumulator => both axes parallel
            dimension_semantics=("parallel", "parallel"),
            vmem_limit_bytes=32 * 1024 * 1024,
        ),
    )(wi, wj, x_i, x_j, packed_meta, w_stacked, b_stacked)


# --------------------------------- "Net" -------------------------------------

def init_params(key, c_in=3, num_classes=8, mean=(0.5, 0.5, 0.5),
                std=(0.5, 0.5, 0.5)):
    k1, k2, k3, k4 = jax.random.split(key, 4)
    return {
        "w1": 0.1 * jax.random.normal(k1, (num_classes, c_in), jnp.float32),
        "b1": 0.01 * jax.random.normal(k2, (num_classes,), jnp.float32),
        "w2": 0.1 * jax.random.normal(k3, (num_classes, c_in), jnp.float32),
        "b2": 0.01 * jax.random.normal(k4, (num_classes,), jnp.float32),
        "mean": jnp.asarray(mean, jnp.float32),
        "std": jnp.asarray(std, jnp.float32),
    }


def forward_train(params, input_i, target_i, indices_i,
                  input_j, target_j, indices_j, mask, per_sample_weight):
    B, C, H, W = input_i.shape
    P = H * W
    K = params["w1"].shape[0]

    # --- fold the per-channel normalization (augment_val) into the conv ---
    inv_std = 1.0 / params["std"]
    w1 = params["w1"] * inv_std[None, :]
    w2 = params["w2"] * inv_std[None, :]
    b1 = params["b1"] - w1 @ params["mean"]
    b2 = params["b2"] - w2 @ params["mean"]
    w_stacked = jnp.concatenate([w1, w2], axis=0).astype(jnp.bfloat16)  # (2K, C)
    b_stacked = jnp.concatenate([b1, b2], axis=0).reshape(2 * K, 1)      # f32

    # --- pixel tiling: pad P up to a multiple of the (128-aligned) tile ---
    tp = min(TILE_TARGET, _round_up(P, 128))
    P_pad = _round_up(P, tp)
    pad = P_pad - P

    def pad_lanes(a, value):
        return jnp.pad(a, ((0, 0), (0, 0), (0, pad)), constant_values=value)

    # images: bf16, real channel count (HBM bytes: 2 x C x 2 per pixel)
    x_i = pad_lanes(input_i.reshape(B, C, P).astype(jnp.bfloat16), 0)
    x_j = pad_lanes(input_j.reshape(B, C, P).astype(jnp.bfloat16), 0)

    # bit-pack target_i / target_j / CutMix mask / valid flag into one int32
    # stream (bits 0-8 / 9-17 / 18 / 19).  The CutMix mask is binary (0/1).
    ti = target_i.astype(jnp.int32).reshape(B, 1, P)
    tj = target_j.astype(jnp.int32).reshape(B, 1, P)
    mk = (mask.reshape(B, 1, P) > 0.5).astype(jnp.int32)
    packed = ti | (tj << 9) | (mk << 18) | (1 << 19)
    # padded lanes: labels = IGNORE_INDEX, mask = 0, valid = 0
    packed = pad_lanes(packed, IGNORE_INDEX | (IGNORE_INDEX << 9))

    wi = per_sample_weight[indices_i].astype(jnp.float32)   # (B,)
    wj = per_sample_weight[indices_j].astype(jnp.float32)   # (B,)

    seg_i_p, seg_j_p, cps_p = fused_forward_train(
        x_i, x_j, packed, wi, wj, w_stacked, b_stacked, tp)

    # torch CrossEntropyLoss(reduction='none') map .mean() divides by ALL real
    # pixels (ignore_index pixels contribute 0 to the numerator).
    denom = float(B * P)
    seg_loss = (jnp.sum(seg_i_p) + jnp.sum(seg_j_p)) / denom
    cps_loss = jnp.sum(cps_p) / denom
    return seg_loss, cps_loss


# ---------------------------------- main --------------------------------------

if __name__ == "__main__":
    # H*W = 255 deliberately not a multiple of 128 to exercise lane padding,
    # the IGNORE_INDEX seg masking and the valid-lane CPS masking.
    B, C, H, W = 2, 3, 17, 15
    NUM_CLASSES = 8
    NUM_SAMPLES = 64

    key = jax.random.PRNGKey(0)
    k1, k2, k3, k4 = jax.random.split(key, 4)

    input_i = jax.random.normal(k1, (B, C, H, W), jnp.float32)
    input_j = jax.random.normal(k2, (B, C, H, W), jnp.float32)
    target_i = jax.random.randint(k3, (B, H, W), 0, NUM_CLASSES).astype(jnp.int32)
    target_j = jax.random.randint(k4, (B, H, W), 0, NUM_CLASSES).astype(jnp.int32)
    # sprinkle ignore_index pixels to exercise the masked CE path
    target_i = target_i.at[:, :2, :].set(IGNORE_INDEX)
    target_j = target_j.at[:, -2:, :].set(IGNORE_INDEX)
    indices_i = jnp.array([1, 3], dtype=jnp.int32)
    indices_j = jnp.array([5, 7], dtype=jnp.int32)
    # CutMix-style binary mask (B, 1, H, W): right half comes from x_j
    mask = jnp.zeros((B, 1, H, W), jnp.float32).at[:, :, :, W // 2:].set(1.0)

    params = init_params(jax.random.PRNGKey(42), c_in=C, num_classes=NUM_CLASSES)
    per_sample_weight = jnp.ones((NUM_SAMPLES,), jnp.float32)  # sample_weight_init=1.0

    fwd = jax.jit(functools.partial(forward_train, params))
    seg_loss, cps_loss = fwd(input_i, target_i, indices_i,
                             input_j, target_j, indices_j,
                             mask, per_sample_weight)
    jax.block_until_ready((seg_loss, cps_loss))
    print("KERNEL_OK")
</pallas_src>

<mosaic_0001>
module attributes {stable_mosaic.version = 11 : i64} {
  func.func @_fused_train_kernel(%arg0: i32, %arg1: i32, %arg2: memref<2xf32, #tpu.memory_space<smem>>, %arg3: memref<2xf32, #tpu.memory_space<smem>>, %arg4: memref<1x3x256xbf16, #tpu.memory_space<vmem>>, %arg5: memref<1x3x256xbf16, #tpu.memory_space<vmem>>, %arg6: memref<1x1x256xi32, #tpu.memory_space<vmem>>, %arg7: memref<16x3xbf16, #tpu.memory_space<vmem>>, %arg8: memref<16x1xf32, #tpu.memory_space<vmem>>, %arg9: memref<1x1x1xf32, #tpu.memory_space<vmem>>, %arg10: memref<1x1x1xf32, #tpu.memory_space<vmem>>, %arg11: memref<1x1x1xf32, #tpu.memory_space<vmem>>) attributes {dimension_semantics = [#tpu.dimension_semantics<parallel>, #tpu.dimension_semantics<parallel>], iteration_bounds = array<i64: 2, 1>, scalar_prefetch = 0 : i64, scratch_operands = 0 : i64, tpu.core_type = #tpu.core_type<tc>, window_params = [{transform_indices = @transform_0, window_bounds = array<i64: 2>}, {transform_indices = @transform_1, window_bounds = array<i64: 2>}, {transform_indices = @transform_2, window_bounds = array<i64: 1, 3, 256>}, {transform_indices = @transform_3, window_bounds = array<i64: 1, 3, 256>}, {transform_indices = @transform_4, window_bounds = array<i64: 1, 1, 256>}, {pipeline_mode = #tpu.pipeline_mode<synchronous>, transform_indices = @transform_5, window_bounds = array<i64: 16, 3>}, {pipeline_mode = #tpu.pipeline_mode<synchronous>, transform_indices = @transform_6, window_bounds = array<i64: 16, 1>}, {transform_indices = @transform_7, window_bounds = array<i64: 1, 1, 1>}, {transform_indices = @transform_8, window_bounds = array<i64: 1, 1, 1>}, {transform_indices = @transform_9, window_bounds = array<i64: 1, 1, 1>}]} {
    %c0 = arith.constant 0 : index
    %c0_0 = arith.constant 0 : index
    %c0_1 = arith.constant 0 : index
    %0 = vector.load %arg4[%c0, %c0_0, %c0_1] : memref<1x3x256xbf16, #tpu.memory_space<vmem>>, vector<1x3x256xbf16>
    %1 = vector.shape_cast %0 : vector<1x3x256xbf16> to vector<3x256xbf16>
    %c0_2 = arith.constant 0 : index
    %c0_3 = arith.constant 0 : index
    %c0_4 = arith.constant 0 : index
    %2 = vector.load %arg5[%c0_2, %c0_3, %c0_4] : memref<1x3x256xbf16, #tpu.memory_space<vmem>>, vector<1x3x256xbf16>
    %3 = vector.shape_cast %2 : vector<1x3x256xbf16> to vector<3x256xbf16>
    %c0_5 = arith.constant 0 : index
    %c0_6 = arith.constant 0 : index
    %c0_7 = arith.constant 0 : index
    %4 = vector.load %arg6[%c0_5, %c0_6, %c0_7] : memref<1x1x256xi32, #tpu.memory_space<vmem>>, vector<1x1x256xi32>
    %5 = vector.shape_cast %4 : vector<1x1x256xi32> to vector<1x256xi32>
    %c0_8 = arith.constant 0 : index
    %c0_9 = arith.constant 0 : index
    %6 = vector.load %arg7[%c0_8, %c0_9] : memref<16x3xbf16, #tpu.memory_space<vmem>>, vector<16x3xbf16>
    %c0_10 = arith.constant 0 : index
    %c0_11 = arith.constant 0 : index
    %7 = vector.load %arg8[%c0_10, %c0_11] : memref<16x1xf32, #tpu.memory_space<vmem>>, vector<16x1xf32>
    %8 = arith.index_cast %arg0 : i32 to index
    %9 = memref.load %arg2[%8] : memref<2xf32, #tpu.memory_space<smem>>
    %10 = arith.index_cast %arg0 : i32 to index
    %11 = memref.load %arg3[%10] : memref<2xf32, #tpu.memory_space<smem>>
    %12 = arith.addf %9, %11 : f32
    %cst = arith.constant 5.000000e-01 : f32
    %13 = arith.mulf %12, %cst : f32
    %c511_i32 = arith.constant 511 : i32
    %14 = vector.broadcast %c511_i32 : i32 to vector<1x256xi32>
    %15 = arith.andi %5, %14 : vector<1x256xi32>
    %c9_i32 = arith.constant 9 : i32
    %16 = vector.broadcast %c9_i32 : i32 to vector<1x256xi32>
    %17 = arith.shrsi %5, %16 : vector<1x256xi32>
    %c511_i32_12 = arith.constant 511 : i32
    %18 = vector.broadcast %c511_i32_12 : i32 to vector<1x256xi32>
    %19 = arith.andi %17, %18 : vector<1x256xi32>
    %c18_i32 = arith.constant 18 : i32
    %20 = vector.broadcast %c18_i32 : i32 to vector<1x256xi32>
    %21 = arith.shrsi %5, %20 : vector<1x256xi32>
    %c1_i32 = arith.constant 1 : i32
    %22 = vector.broadcast %c1_i32 : i32 to vector<1x256xi32>
    %23 = arith.andi %21, %22 : vector<1x256xi32>
    %24 = arith.sitofp %23 : vector<1x256xi32> to vector<1x256xf32>
    %c19_i32 = arith.constant 19 : i32
    %25 = vector.broadcast %c19_i32 : i32 to vector<1x256xi32>
    %26 = arith.shrsi %5, %25 : vector<1x256xi32>
    %c1_i32_13 = arith.constant 1 : i32
    %27 = vector.broadcast %c1_i32_13 : i32 to vector<1x256xi32>
    %28 = arith.andi %26, %27 : vector<1x256xi32>
    %29 = arith.sitofp %28 : vector<1x256xi32> to vector<1x256xf32>
    %cst_14 = arith.constant dense<0.000000e+00> : vector<16x256xf32>
    %30 = tpu.matmul %6, %1, %cst_14 {dimension_numbers = #tpu.dot_dimension_numbers<[1], [0], [0], [1], [0, 0, 1, 1], [], []>} : vector<16x3xbf16>, vector<3x256xbf16>, vector<16x256xf32> -> vector<16x256xf32>
    %31 = vector.broadcast %7 : vector<16x1xf32> to vector<16x256xf32>
    %32 = arith.addf %30, %31 : vector<16x256xf32>
    %cst_15 = arith.constant dense<0.000000e+00> : vector<16x256xf32>
    %33 = tpu.matmul %6, %3, %cst_15 {dimension_numbers = #tpu.dot_dimension_numbers<[1], [0], [0], [1], [0, 0, 1, 1], [], []>} : vector<16x3xbf16>, vector<3x256xbf16>, vector<16x256xf32> -> vector<16x256xf32>
    %34 = vector.broadcast %7 : vector<16x1xf32> to vector<16x256xf32>
    %35 = arith.addf %33, %34 : vector<16x256xf32>
    %36 = arith.subf %35, %32 : vector<16x256xf32>
    %37 = vector.broadcast %24 : vector<1x256xf32> to vector<16x256xf32>
    %38 = arith.mulf %37, %36 : vector<16x256xf32>
    %39 = arith.addf %32, %38 : vector<16x256xf32>
    %40 = vector.extract_strided_slice %32 {offsets = [0, 0], sizes = [8, 256], strides = [1, 1]} : vector<16x256xf32> to vector<8x256xf32>
    %41 = vector.extract_strided_slice %32 {offsets = [8, 0], sizes = [8, 256], strides = [1, 1]} : vector<16x256xf32> to vector<8x256xf32>
    %42 = vector.extract_strided_slice %35 {offsets = [0, 0], sizes = [8, 256], strides = [1, 1]} : vector<16x256xf32> to vector<8x256xf32>
    %43 = vector.extract_strided_slice %35 {offsets = [8, 0], sizes = [8, 256], strides = [1, 1]} : vector<16x256xf32> to vector<8x256xf32>
    %44 = vector.extract_strided_slice %39 {offsets = [0, 0], sizes = [8, 256], strides = [1, 1]} : vector<16x256xf32> to vector<8x256xf32>
    %45 = vector.extract_strided_slice %39 {offsets = [8, 0], sizes = [8, 256], strides = [1, 1]} : vector<16x256xf32> to vector<8x256xf32>
    %46 = tpu.iota {dimensions = array<i32: 0>} : vector<8x1xi32>
    %cst_16 = arith.constant 1.000000e+00 : f32
    %47 = vector.broadcast %cst_16 : f32 to vector<1x8xf32>
    %cst_17 = arith.constant dense<0xFF800000> : vector<256xf32>
    %48 = vector.multi_reduction <maximumf>, %40, %cst_17 [0] : vector<8x256xf32> to vector<256xf32>
    %49 = vector.shape_cast %48 : vector<256xf32> to vector<1x256xf32>
    %cst_18 = arith.constant dense<0xFF800000> : vector<256xf32>
    %50 = vector.multi_reduction <maximumf>, %41, %cst_18 [0] : vector<8x256xf32> to vector<256xf32>
    %51 = vector.shape_cast %50 : vector<256xf32> to vector<1x256xf32>
    %cst_19 = arith.constant dense<0xFF800000> : vector<256xf32>
    %52 = vector.multi_reduction <maximumf>, %42, %cst_19 [0] : vector<8x256xf32> to vector<256xf32>
    %53 = vector.shape_cast %52 : vector<256xf32> to vector<1x256xf32>
    %cst_20 = arith.constant dense<0xFF800000> : vector<256xf32>
    %54 = vector.multi_reduction <maximumf>, %43, %cst_20 [0] : vector<8x256xf32> to vector<256xf32>
    %55 = vector.shape_cast %54 : vector<256xf32> to vector<1x256xf32>
    %cst_21 = arith.constant dense<0xFF800000> : vector<256xf32>
    %56 = vector.multi_reduction <maximumf>, %44, %cst_21 [0] : vector<8x256xf32> to vector<256xf32>
    %57 = vector.shape_cast %56 : vector<256xf32> to vector<1x256xf32>
    %cst_22 = arith.constant dense<0xFF800000> : vector<256xf32>
    %58 = vector.multi_reduction <maximumf>, %45, %cst_22 [0] : vector<8x256xf32> to vector<256xf32>
    %59 = vector.shape_cast %58 : vector<256xf32> to vector<1x256xf32>
    %60 = vector.broadcast %57 : vector<1x256xf32> to vector<8x256xf32>
    %61 = arith.cmpf oeq, %44, %60 : vector<8x256xf32>
    %c8_i32 = arith.constant 8 : i32
    %62 = vector.shape_cast %46 : vector<8x1xi32> to vector<8x1xi32>
    %63 = vector.broadcast %62 : vector<8x1xi32> to vector<8x256xi32>
    %64 = vector.broadcast %c8_i32 : i32 to vector<8x256xi32>
    %65 = arith.select %61, %63, %64 : vector<8x256xi1>, vector<8x256xi32>
    %cst_23 = arith.constant dense<2147483647> : vector<256xi32>
    %66 = vector.multi_reduction <minsi>, %65, %cst_23 [0] : vector<8x256xi32> to vector<256xi32>
    %67 = vector.shape_cast %66 : vector<256xi32> to vector<1x256xi32>
    %68 = vector.broadcast %59 : vector<1x256xf32> to vector<8x256xf32>
    %69 = arith.cmpf oeq, %45, %68 : vector<8x256xf32>
    %c8_i32_24 = arith.constant 8 : i32
    %70 = vector.shape_cast %46 : vector<8x1xi32> to vector<8x1xi32>
    %71 = vector.broadcast %70 : vector<8x1xi32> to vector<8x256xi32>
    %72 = vector.broadcast %c8_i32_24 : i32 to vector<8x256xi32>
    %73 = arith.select %69, %71, %72 : vector<8x256xi1>, vector<8x256xi32>
    %cst_25 = arith.constant dense<2147483647> : vector<256xi32>
    %74 = vector.multi_reduction <minsi>, %73, %cst_25 [0] : vector<8x256xi32> to vector<256xi32>
    %75 = vector.shape_cast %74 : vector<256xi32> to vector<1x256xi32>
    %76 = vector.broadcast %46 : vector<8x1xi32> to vector<8x256xi32>
    %77 = vector.broadcast %15 : vector<1x256xi32> to vector<8x256xi32>
    %78 = arith.cmpi eq, %76, %77 : vector<8x256xi32>
    %79 = arith.extui %78 : vector<8x256xi1> to vector<8x256xi32>
    %80 = arith.sitofp %79 : vector<8x256xi32> to vector<8x256xf32>
    %81 = vector.broadcast %46 : vector<8x1xi32> to vector<8x256xi32>
    %82 = vector.broadcast %19 : vector<1x256xi32> to vector<8x256xi32>
    %83 = arith.cmpi eq, %81, %82 : vector<8x256xi32>
    %84 = arith.extui %83 : vector<8x256xi1> to vector<8x256xi32>
    %85 = arith.sitofp %84 : vector<8x256xi32> to vector<8x256xf32>
    %86 = vector.broadcast %46 : vector<8x1xi32> to vector<8x256xi32>
    %87 = vector.broadcast %67 : vector<1x256xi32> to vector<8x256xi32>
    %88 = arith.cmpi eq, %86, %87 : vector<8x256xi32>
    %89 = arith.extui %88 : vector<8x256xi1> to vector<8x256xi32>
    %90 = arith.sitofp %89 : vector<8x256xi32> to vector<8x256xf32>
    %91 = vector.broadcast %46 : vector<8x1xi32> to vector<8x256xi32>
    %92 = vector.broadcast %75 : vector<1x256xi32> to vector<8x256xi32>
    %93 = arith.cmpi eq, %91, %92 : vector<8x256xi32>
    %94 = arith.extui %93 : vector<8x256xi1> to vector<8x256xi32>
    %95 = arith.sitofp %94 : vector<8x256xi32> to vector<8x256xf32>
    %96 = vector.broadcast %49 : vector<1x256xf32> to vector<8x256xf32>
    %97 = arith.subf %40, %96 : vector<8x256xf32>
    %98 = math.exp %97 : vector<8x256xf32>
    %cst_26 = arith.constant dense<0.000000e+00> : vector<1x256xf32>
    %99 = tpu.matmul %47, %98, %cst_26 {dimension_numbers = #tpu.dot_dimension_numbers<[1], [0], [0], [1], [0, 0, 1, 1], [], []>} : vector<1x8xf32>, vector<8x256xf32>, vector<1x256xf32> -> vector<1x256xf32>
    %100 = math.log %99 : vector<1x256xf32>
    %101 = arith.addf %49, %100 : vector<1x256xf32>
    %102 = vector.broadcast %51 : vector<1x256xf32> to vector<8x256xf32>
    %103 = arith.subf %41, %102 : vector<8x256xf32>
    %104 = math.exp %103 : vector<8x256xf32>
    %cst_27 = arith.constant dense<0.000000e+00> : vector<1x256xf32>
    %105 = tpu.matmul %47, %104, %cst_27 {dimension_numbers = #tpu.dot_dimension_numbers<[1], [0], [0], [1], [0, 0, 1, 1], [], []>} : vector<1x8xf32>, vector<8x256xf32>, vector<1x256xf32> -> vector<1x256xf32>
    %106 = math.log %105 : vector<1x256xf32>
    %107 = arith.addf %51, %106 : vector<1x256xf32>
    %108 = arith.addf %101, %107 : vector<1x256xf32>
    %109 = arith.addf %40, %41 : vector<8x256xf32>
    %110 = arith.mulf %109, %80 : vector<8x256xf32>
    %cst_28 = arith.constant dense<0.000000e+00> : vector<1x256xf32>
    %111 = tpu.matmul %47, %110, %cst_28 {dimension_numbers = #tpu.dot_dimension_numbers<[1], [0], [0], [1], [0, 0, 1, 1], [], []>} : vector<1x8xf32>, vector<8x256xf32>, vector<1x256xf32> -> vector<1x256xf32>
    %112 = arith.subf %108, %111 : vector<1x256xf32>
    %c255_i32 = arith.constant 255 : i32
    %113 = vector.broadcast %c255_i32 : i32 to vector<1x256xi32>
    %114 = arith.cmpi ne, %15, %113 : vector<1x256xi32>
    %cst_29 = arith.constant 0.000000e+00 : f32
    %115 = vector.broadcast %cst_29 : f32 to vector<1x256xf32>
    %116 = arith.select %114, %112, %115 : vector<1x256xi1>, vector<1x256xf32>
    %117 = vector.broadcast %53 : vector<1x256xf32> to vector<8x256xf32>
    %118 = arith.subf %42, %117 : vector<8x256xf32>
    %119 = math.exp %118 : vector<8x256xf32>
    %cst_30 = arith.constant dense<0.000000e+00> : vector<1x256xf32>
    %120 = tpu.matmul %47, %119, %cst_30 {dimension_numbers = #tpu.dot_dimension_numbers<[1], [0], [0], [1], [0, 0, 1, 1], [], []>} : vector<1x8xf32>, vector<8x256xf32>, vector<1x256xf32> -> vector<1x256xf32>
    %121 = math.log %120 : vector<1x256xf32>
    %122 = arith.addf %53, %121 : vector<1x256xf32>
    %123 = vector.broadcast %55 : vector<1x256xf32> to vector<8x256xf32>
    %124 = arith.subf %43, %123 : vector<8x256xf32>
    %125 = math.exp %124 : vector<8x256xf32>
    %cst_31 = arith.constant dense<0.000000e+00> : vector<1x256xf32>
    %126 = tpu.matmul %47, %125, %cst_31 {dimension_numbers = #tpu.dot_dimension_numbers<[1], [0], [0], [1], [0, 0, 1, 1], [], []>} : vector<1x8xf32>, vector<8x256xf32>, vector<1x256xf32> -> vector<1x256xf32>
    %127 = math.log %126 : vector<1x256xf32>
    %128 = arith.addf %55, %127 : vector<1x256xf32>
    %129 = arith.addf %122, %128 : vector<1x256xf32>
    %130 = arith.addf %42, %43 : vector<8x256xf32>
    %131 = arith.mulf %130, %85 : vector<8x256xf32>
    %cst_32 = arith.constant dense<0.000000e+00> : vector<1x256xf32>
    %132 = tpu.matmul %47, %131, %cst_32 {dimension_numbers = #tpu.dot_dimension_numbers<[1], [0], [0], [1], [0, 0, 1, 1], [], []>} : vector<1x8xf32>, vector<8x256xf32>, vector<1x256xf32> -> vector<1x256xf32>
    %133 = arith.subf %129, %132 : vector<1x256xf32>
    %c255_i32_33 = arith.constant 255 : i32
    %134 = vector.broadcast %c255_i32_33 : i32 to vector<1x256xi32>
    %135 = arith.cmpi ne, %19, %134 : vector<1x256xi32>
    %cst_34 = arith.constant 0.000000e+00 : f32
    %136 = vector.broadcast %cst_34 : f32 to vector<1x256xf32>
    %137 = arith.select %135, %133, %136 : vector<1x256xi1>, vector<1x256xf32>
    %138 = vector.broadcast %57 : vector<1x256xf32> to vector<8x256xf32>
    %139 = arith.subf %44, %138 : vector<8x256xf32>
    %140 = math.exp %139 : vector<8x256xf32>
    %cst_35 = arith.constant dense<0.000000e+00> : vector<1x256xf32>
    %141 = tpu.matmul %47, %140, %cst_35 {dimension_numbers = #tpu.dot_dimension_numbers<[1], [0], [0], [1], [0, 0, 1, 1], [], []>} : vector<1x8xf32>, vector<8x256xf32>, vector<1x256xf32> -> vector<1x256xf32>
    %142 = math.log %141 : vector<1x256xf32>
    %143 = arith.addf %57, %142 : vector<1x256xf32>
    %144 = arith.mulf %44, %95 : vector<8x256xf32>
    %cst_36 = arith.constant dense<0.000000e+00> : vector<1x256xf32>
    %145 = tpu.matmul %47, %144, %cst_36 {dimension_numbers = #tpu.dot_dimension_numbers<[1], [0], [0], [1], [0, 0, 1, 1], [], []>} : vector<1x8xf32>, vector<8x256xf32>, vector<1x256xf32> -> vector<1x256xf32>
    %146 = arith.subf %143, %145 : vector<1x256xf32>
    %147 = vector.broadcast %59 : vector<1x256xf32> to vector<8x256xf32>
    %148 = arith.subf %45, %147 : vector<8x256xf32>
    %149 = math.exp %148 : vector<8x256xf32>
    %cst_37 = arith.constant dense<0.000000e+00> : vector<1x256xf32>
    %150 = tpu.matmul %47, %149, %cst_37 {dimension_numbers = #tpu.dot_dimension_numbers<[1], [0], [0], [1], [0, 0, 1, 1], [], []>} : vector<1x8xf32>, vector<8x256xf32>, vector<1x256xf32> -> vector<1x256xf32>
    %151 = math.log %150 : vector<1x256xf32>
    %152 = arith.addf %59, %151 : vector<1x256xf32>
    %153 = arith.addf %146, %152 : vector<1x256xf32>
    %154 = arith.mulf %45, %90 : vector<8x256xf32>
    %cst_38 = arith.constant dense<0.000000e+00> : vector<1x256xf32>
    %155 = tpu.matmul %47, %154, %cst_38 {dimension_numbers = #tpu.dot_dimension_numbers<[1], [0], [0], [1], [0, 0, 1, 1], [], []>} : vector<1x8xf32>, vector<8x256xf32>, vector<1x256xf32> -> vector<1x256xf32>
    %156 = arith.subf %153, %155 : vector<1x256xf32>
    %157 = arith.mulf %156, %29 : vector<1x256xf32>
    %cst_39 = arith.constant dense<0.000000e+00> : vector<1xf32>
    %158 = vector.multi_reduction <add>, %116, %cst_39 [1] : vector<1x256xf32> to vector<1xf32>
    %159 = vector.shape_cast %158 : vector<1xf32> to vector<1x1xf32>
    %160 = vector.broadcast %9 : f32 to vector<1x1xf32>
    %161 = arith.mulf %159, %160 : vector<1x1xf32>
    %c0_40 = arith.constant 0 : index
    %c0_41 = arith.constant 0 : index
    %c0_42 = arith.constant 0 : index
    %162 = vector.load %arg9[%c0_40, %c0_41, %c0_42] : memref<1x1x1xf32, #tpu.memory_space<vmem>>, vector<1x1x1xf32>
    %163 = vector.shape_cast %162 : vector<1x1x1xf32> to vector<1x1xf32>
    %164 = vector.shape_cast %161 : vector<1x1xf32> to vector<1x1x1xf32>
    tpu.vector_store %arg9[%c0_40, %c0_41, %c0_42], %164 {strides = array<i32>} : memref<1x1x1xf32, #tpu.memory_space<vmem>>, vector<1x1x1xf32>,
    %cst_43 = arith.constant dense<0.000000e+00> : vector<1xf32>
    %165 = vector.multi_reduction <add>, %137, %cst_43 [1] : vector<1x256xf32> to vector<1xf32>
    %166 = vector.shape_cast %165 : vector<1xf32> to vector<1x1xf32>
    %167 = vector.broadcast %11 : f32 to vector<1x1xf32>
    %168 = arith.mulf %166, %167 : vector<1x1xf32>
    %c0_44 = arith.constant 0 : index
    %c0_45 = arith.constant 0 : index
    %c0_46 = arith.constant 0 : index
    %169 = vector.load %arg10[%c0_44, %c0_45, %c0_46] : memref<1x1x1xf32, #tpu.memory_space<vmem>>, vector<1x1x1xf32>
    %170 = vector.shape_cast %169 : vector<1x1x1xf32> to vector<1x1xf32>
    %171 = vector.shape_cast %168 : vector<1x1xf32> to vector<1x1x1xf32>
    tpu.vector_store %arg10[%c0_44, %c0_45, %c0_46], %171 {strides = array<i32>} : memref<1x1x1xf32, #tpu.memory_space<vmem>>, vector<1x1x1xf32>,
    %cst_47 = arith.constant dense<0.000000e+00> : vector<1xf32>
    %172 = vector.multi_reduction <add>, %157, %cst_47 [1] : vector<1x256xf32> to vector<1xf32>
    %173 = vector.shape_cast %172 : vector<1xf32> to vector<1x1xf32>
    %174 = vector.broadcast %13 : f32 to vector<1x1xf32>
    %175 = arith.mulf %173, %174 : vector<1x1xf32>
    %c0_48 = arith.constant 0 : index
    %c0_49 = arith.constant 0 : index
    %c0_50 = arith.constant 0 : index
    %176 = vector.load %arg11[%c0_48, %c0_49, %c0_50] : memref<1x1x1xf32, #tpu.memory_space<vmem>>, vector<1x1x1xf32>
    %177 = vector.shape_cast %176 : vector<1x1x1xf32> to vector<1x1xf32>
    %178 = vector.shape_cast %175 : vector<1x1xf32> to vector<1x1x1xf32>
    tpu.vector_store %arg11[%c0_48, %c0_49, %c0_50], %178 {strides = array<i32>} : memref<1x1x1xf32, #tpu.memory_space<vmem>>, vector<1x1x1xf32>,
    return
  }
  func.func @transform_0(%arg0: i32, %arg1: i32) -> i32 {
    %c0_i32 = arith.constant 0 : i32
    %c0_i32_0 = arith.constant 0 : i32
    return %c0_i32 : i32
  }
  func.func @transform_1(%arg0: i32, %arg1: i32) -> i32 {
    %c0_i32 = arith.constant 0 : i32
    %c0_i32_0 = arith.constant 0 : i32
    return %c0_i32 : i32
  }
  func.func @transform_2(%arg0: i32, %arg1: i32) -> (i32, i32, i32) {
    %c0_i32 = arith.constant 0 : i32
    %c0_i32_0 = arith.constant 0 : i32
    return %arg0, %c0_i32, %arg1 : i32, i32, i32
  }
  func.func @transform_3(%arg0: i32, %arg1: i32) -> (i32, i32, i32) {
    %c0_i32 = arith.constant 0 : i32
    %c0_i32_0 = arith.constant 0 : i32
    return %arg0, %c0_i32, %arg1 : i32, i32, i32
  }
  func.func @transform_4(%arg0: i32, %arg1: i32) -> (i32, i32, i32) {
    %c0_i32 = arith.constant 0 : i32
    %c0_i32_0 = arith.constant 0 : i32
    return %arg0, %c0_i32, %arg1 : i32, i32, i32
  }
  func.func @transform_5(%arg0: i32, %arg1: i32) -> (i32, i32) {
    %c0_i32 = arith.constant 0 : i32
    %c0_i32_0 = arith.constant 0 : i32
    %c0_i32_1 = arith.constant 0 : i32
    return %c0_i32, %c0_i32_0 : i32, i32
  }
  func.func @transform_6(%arg0: i32, %arg1: i32) -> (i32, i32) {
    %c0_i32 = arith.constant 0 : i32
    %c0_i32_0 = arith.constant 0 : i32
    %c0_i32_1 = arith.constant 0 : i32
    return %c0_i32, %c0_i32_0 : i32, i32
  }
  func.func @transform_7(%arg0: i32, %arg1: i32) -> (i32, i32, i32) {
    %c1_i32 = arith.constant 1 : i32
    %0 = arith.muli %arg0, %c1_i32 : i32
    %1 = arith.addi %0, %arg1 : i32
    %c0_i32 = arith.constant 0 : i32
    %c0_i32_0 = arith.constant 0 : i32
    %c0_i32_1 = arith.constant 0 : i32
    return %1, %c0_i32, %c0_i32_0 : i32, i32, i32
  }
  func.func @transform_8(%arg0: i32, %arg1: i32) -> (i32, i32, i32) {
    %c1_i32 = arith.constant 1 : i32
    %0 = arith.muli %arg0, %c1_i32 : i32
    %1 = arith.addi %0, %arg1 : i32
    %c0_i32 = arith.constant 0 : i32
    %c0_i32_0 = arith.constant 0 : i32
    %c0_i32_1 = arith.constant 0 : i32
    return %1, %c0_i32, %c0_i32_0 : i32, i32, i32
  }
  func.func @transform_9(%arg0: i32, %arg1: i32) -> (i32, i32, i32) {
    %c1_i32 = arith.constant 1 : i32
    %0 = arith.muli %arg0, %c1_i32 : i32
    %1 = arith.addi %0, %arg1 : i32
    %c0_i32 = arith.constant 0 : i32
    %c0_i32_0 = arith.constant 0 : i32
    %c0_i32_1 = arith.constant 0 : i32
    return %1, %c0_i32, %c0_i32_0 : i32, i32, i32
  }
}

</mosaic_0001>

<llo_original>
// kernel: forward_train.1
$region0: #{forward_train.1}
  #allocation0 [shape = 'u32[]', space=smem, size = 0x4, offset = 0x4, fixed_abs, tag = 'smem constant byte address 0x4 - core index']
  #allocation1 [shape = 'u32[144,128]{1,0:T(1,128)}', space=vmem, size = 0x12000, scoped, tag = 'internal scratch']
  %s0 = inlined_call_operand.vmem [shape: f32[2], index: 0, kind: input, shape index: {}]
  %s1 = inlined_call_operand.vmem [shape: f32[2], index: 1, kind: input, shape index: {}]
  %s2 = inlined_call_operand.vmem [shape: bf16[2,3,256], index: 2, kind: input, shape index: {}]
  %s3 = inlined_call_operand.vmem [shape: bf16[2,3,256], index: 3, kind: input, shape index: {}]
  %s4 = inlined_call_operand.vmem [shape: s32[2,1,256], index: 4, kind: input, shape index: {}]
  %s5 = inlined_call_operand.vmem [shape: bf16[16,3], index: 5, kind: input, shape index: {}]
  %s6 = inlined_call_operand.vmem [shape: f32[16,1], index: 6, kind: input, shape index: {}]
  %s7 = inlined_call_operand.vmem [shape: f32[2,1,1], index: 7, kind: output, shape index: {0}]
  %s8 = inlined_call_operand.vmem [shape: f32[2,1,1], index: 8, kind: output, shape index: {1}]
  %s9 = inlined_call_operand.vmem [shape: f32[2,1,1], index: 9, kind: output, shape index: {2}]
  %10 = xla_tuple %s7, %s8, %s9
  %s11 = sld [smem:[#allocation0]]
  $region85: #{forward_train.1} parent=0
    _
  %s13 = ssub.s32 1, %s11
  %s14 = scalar_select 0, %s13, %s11
  $region1: #{forward_train.1} parent=0
    #allocation2 [shape = 'u8[512]{0}', space=smem, size = 0x200, scoped, tag = 'input window, operand 0, single buffered']
    #allocation3 [shape = 's32[2]{0}', space=sflag, size = 0x8, scoped, tag = 'scoped memory for forward_train.1']
    #allocation4 [shape = 'u8[512]{0}', space=smem, size = 0x200, scoped, tag = 'input window, operand 1, single buffered']
    #allocation5 [shape = 's32[1]{0}', space=sflag, size = 0x4, scoped, tag = 'scoped memory for forward_train.1']
    %15 = vsyncpa [#allocation3], 0
    %16 = vsyncpa [#allocation5], 0
    loop: start=0, step=1, limit=4
    $region2: #{forward_train.1} parent=1 // loop_pre_header
      _
    $region3: #{forward_train.1} parent=1 // loop_header
      %s18 = sphi 0, %s22
      %p19 = scmp.ge.s32.totalorder %s18, 4
      %s25 = sphi 0, %s37
      %s26 = sphi 0, %s33
      %s27 = sphi 0, %s25
      %s28 = sphi 0, %s26
      %s29 = sphi 0, %s27
      %s30 = sphi 0, %s28
      %s38 = sphi 0, %s38
      %s40 = sphi 0, %s38
      %s41 = sphi 0, %s40
      %s55 = sphi 0, %s41
      %s59 = sphi 0, %s59
      %s61 = sphi 0, %s59
      %s62 = sphi 0, %s61
      %s76 = sphi 0, %s62
      %s84 = sphi 0, %s86
      %s87 = sphi 0, %s84
      %s88 = sphi 0, %s87
      %s104 = sphi 0, %s88
      %s112 = sphi 0, %s114
      %s115 = sphi 0, %s112
      %s116 = sphi 0, %s115
      %s132 = sphi 0, %s116
      %s140 = sphi 0, %s142
      %s143 = sphi 0, %s140
      %s144 = sphi 0, %s143
      %s160 = sphi 0, %s144
      %s164 = sphi 0, %s164
      %s166 = sphi 0, %s164
      %s167 = sphi 0, %s166
      %s181 = sphi 0, %s167
      %s185 = sphi 0, %s185
      %s187 = sphi 0, %s185
      %s188 = sphi 0, %s187
      %s202 = sphi 0, %s188
      %s210 = sphi 0, %s212
      %s213 = sphi 0, %s210
      %s214 = sphi 0, %s213
      %s230 = sphi 0, %s214
      %s238 = sphi 0, %s240
      %s241 = sphi 0, %s238
      %s242 = sphi 0, %s241
      %s258 = sphi 0, %s242
      %s266 = sphi 0, %s268
      %s269 = sphi 0, %s266
      %s270 = sphi 0, %s269
      %s286 = sphi 0, %s270
    $region4: #{forward_train.1} parent=1 // loop_header_branch
      %21 = sbr.rel (%p19) target = $region8
    $region5: #{forward_train.1} parent=1 // loop_body
      %s23 = ssub.s32 %s18, 1
      %s24 = ssub.s32 %s18, 2
      %s31 = sadd.s32 1, %s26
      %p32 = scmp.ge.s32.totalorder %s31, 1
      %s33 = scalar_select %p32, 0, %s31
      %s34 = sadd.s32 1, %s25
      %s35 = scalar_select %p32, %s34, %s25
      %p36 = scmp.ge.s32.totalorder %s35, 2
      %s37 = scalar_select %p36, 0, %s35
      %s39 = sadd.s32 %s38, 1
      %p42 = scmp.eq.s32.totalorder %s18, 1
      %p43 = scmp.ne.s32.totalorder %s38, %s40
      %p44 = scmp.eq.s32.totalorder %s18, 0
      %p45 = por %p43, %p44
      %p46 = scmp.ne.s32.totalorder %s38, %s40
      %p47 = scmp.eq.s32.totalorder %s23, 1
      %p48 = por %p46, %p47
      %p49 = scmp.ne.s32.totalorder %s40, %s41
      %p50 = scmp.eq.s32.totalorder %s23, 0
      %p51 = por %p49, %p50
      %p52 = scmp.ne.s32.totalorder %s40, %s41
      %p53 = scmp.eq.s32.totalorder %s24, 1
      %p54 = por %p52, %p53
      %p56 = scmp.ne.s32.totalorder %s41, %s55
      %p57 = scmp.eq.s32.totalorder %s24, 0
      %p58 = por %p56, %p57
      %s60 = sadd.s32 %s59, 1
      %p63 = scmp.eq.s32.totalorder %s18, 1
      %p64 = scmp.ne.s32.totalorder %s59, %s61
      %p65 = scmp.eq.s32.totalorder %s18, 0
      %p66 = por %p64, %p65
      %p67 = scmp.ne.s32.totalorder %s59, %s61
      %p68 = scmp.eq.s32.totalorder %s23, 1
      %p69 = por %p67, %p68
      %p70 = scmp.ne.s32.totalorder %s61, %s62
      %p71 = scmp.eq.s32.totalorder %s23, 0
      %p72 = por %p70, %p71
      %p73 = scmp.ne.s32.totalorder %s61, %s62
      %p74 = scmp.eq.s32.totalorder %s24, 1
      %p75 = por %p73, %p74
      %p77 = scmp.ne.s32.totalorder %s62, %s76
      %p78 = scmp.eq.s32.totalorder %s24, 0
      %p79 = por %p77, %p78
      %s80 = ssub.s32 %s25, %s37
      %s81 = ssub.s32 %s26, %s33
      %s82 = sor.u32 %s80, %s81
      %p83 = scmp.eq.s32.totalorder %s82, 0
      %s85 = sadd.s32 %s84, 1
      %s86 = scalar_select %p83, %s84, %s85
      %p89 = pneg %p83
      %p90 = scmp.eq.s32.totalorder %s18, 1
      %p91 = por %p89, %p90
      %p92 = scmp.ne.s32.totalorder %s84, %s87
      %p93 = scmp.eq.s32.totalorder %s18, 0
      %p94 = por %p92, %p93
      %p95 = scmp.ne.s32.totalorder %s84, %s87
      %p96 = scmp.eq.s32.totalorder %s23, 1
      %p97 = por %p95, %p96
      %p98 = scmp.ne.s32.totalorder %s87, %s88
      %p99 = scmp.eq.s32.totalorder %s23, 0
      %p100 = por %p98, %p99
      %p101 = scmp.ne.s32.totalorder %s87, %s88
      %p102 = scmp.eq.s32.totalorder %s24, 1
      %p103 = por %p101, %p102
      %p105 = scmp.ne.s32.totalorder %s88, %s104
      %p106 = scmp.eq.s32.totalorder %s24, 0
      %p107 = por %p105, %p106
      %s108 = ssub.s32 %s25, %s37
      %s109 = ssub.s32 %s26, %s33
      %s110 = sor.u32 %s108, %s109
      %p111 = scmp.eq.s32.totalorder %s110, 0
      %s113 = sadd.s32 %s112, 1
      %s114 = scalar_select %p111, %s112, %s113
      %p117 = pneg %p111
      %p118 = scmp.eq.s32.totalorder %s18, 1
      %p119 = por %p117, %p118
      %p120 = scmp.ne.s32.totalorder %s112, %s115
      %p121 = scmp.eq.s32.totalorder %s18, 0
      %p122 = por %p120, %p121
      %p123 = scmp.ne.s32.totalorder %s112, %s115
      %p124 = scmp.eq.s32.totalorder %s23, 1
      %p125 = por %p123, %p124
      %p126 = scmp.ne.s32.totalorder %s115, %s116
      %p127 = scmp.eq.s32.totalorder %s23, 0
      %p128 = por %p126, %p127
      %p129 = scmp.ne.s32.totalorder %s115, %s116
      %p130 = scmp.eq.s32.totalorder %s24, 1
      %p131 = por %p129, %p130
      %p133 = scmp.ne.s32.totalorder %s116, %s132
      %p134 = scmp.eq.s32.totalorder %s24, 0
      %p135 = por %p133, %p134
      %s136 = ssub.s32 %s25, %s37
      %s137 = ssub.s32 %s26, %s33
      %s138 = sor.u32 %s136, %s137
      %p139 = scmp.eq.s32.totalorder %s138, 0
      %s141 = sadd.s32 %s140, 1
      %s142 = scalar_select %p139, %s140, %s141
      %p145 = pneg %p139
      %p146 = scmp.eq.s32.totalorder %s18, 1
      %p147 = por %p145, %p146
      %p148 = scmp.ne.s32.totalorder %s140, %s143
      %p149 = scmp.eq.s32.totalorder %s18, 0
      %p150 = por %p148, %p149
      %p151 = scmp.ne.s32.totalorder %s140, %s143
      %p152 = scmp.eq.s32.totalorder %s23, 1
      %p153 = por %p151, %p152
      %p154 = scmp.ne.s32.totalorder %s143, %s144
      %p155 = scmp.eq.s32.totalorder %s23, 0
      %p156 = por %p154, %p155
      %p157 = scmp.ne.s32.totalorder %s143, %s144
      %p158 = scmp.eq.s32.totalorder %s24, 1
      %p159 = por %p157, %p158
      %p161 = scmp.ne.s32.totalorder %s144, %s160
      %p162 = scmp.eq.s32.totalorder %s24, 0
      %p163 = por %p161, %p162
      %s165 = sadd.s32 %s164, 1
      %p168 = scmp.eq.s32.totalorder %s18, 1
      %p169 = scmp.ne.s32.totalorder %s164, %s166
      %p170 = scmp.eq.s32.totalorder %s18, 0
      %p171 = por %p169, %p170
      %p172 = scmp.ne.s32.totalorder %s164, %s166
      %p173 = scmp.eq.s32.totalorder %s23, 1
      %p174 = por %p172, %p173
      %p175 = scmp.ne.s32.totalorder %s166, %s167
      %p176 = scmp.eq.s32.totalorder %s23, 0
      %p177 = por %p175, %p176
      %p178 = scmp.ne.s32.totalorder %s166, %s167
      %p179 = scmp.eq.s32.totalorder %s24, 1
      %p180 = por %p178, %p179
      %p182 = scmp.ne.s32.totalorder %s167, %s181
      %p183 = scmp.eq.s32.totalorder %s24, 0
      %p184 = por %p182, %p183
      %s186 = sadd.s32 %s185, 1
      %p189 = scmp.eq.s32.totalorder %s18, 1
      %p190 = scmp.ne.s32.totalorder %s185, %s187
      %p191 = scmp.eq.s32.totalorder %s18, 0
      %p192 = por %p190, %p191
      %p193 = scmp.ne.s32.totalorder %s185, %s187
      %p194 = scmp.eq.s32.totalorder %s23, 1
      %p195 = por %p193, %p194
      %p196 = scmp.ne.s32.totalorder %s187, %s188
      %p197 = scmp.eq.s32.totalorder %s23, 0
      %p198 = por %p196, %p197
      %p199 = scmp.ne.s32.totalorder %s187, %s188
      %p200 = scmp.eq.s32.totalorder %s24, 1
      %p201 = por %p199, %p200
      %p203 = scmp.ne.s32.totalorder %s188, %s202
      %p204 = scmp.eq.s32.totalorder %s24, 0
      %p205 = por %p203, %p204
      %s206 = sadd.s32 %s25, %s26
      %s207 = sadd.s32 %s37, %s33
      %s208 = ssub.s32 %s206, %s207
      %p209 = scmp.eq.s32.totalorder %s208, 0
      %s211 = sadd.s32 %s210, 1
      %s212 = scalar_select %p209, %s210, %s211
      %p215 = pneg %p209
      %p216 = scmp.eq.s32.totalorder %s18, 1
      %p217 = por %p215, %p216
      %p218 = scmp.ne.s32.totalorder %s210, %s213
      %p219 = scmp.eq.s32.totalorder %s18, 0
      %p220 = por %p218, %p219
      %p221 = scmp.ne.s32.totalorder %s210, %s213
      %p222 = scmp.eq.s32.totalorder %s23, 1
      %p223 = por %p221, %p222
      %p224 = scmp.ne.s32.totalorder %s213, %s214
      %p225 = scmp.eq.s32.totalorder %s23, 0
      %p226 = por %p224, %p225
      %p227 = scmp.ne.s32.totalorder %s213, %s214
      %p228 = scmp.eq.s32.totalorder %s24, 1
      %p229 = por %p227, %p228
      %p231 = scmp.ne.s32.totalorder %s214, %s230
      %p232 = scmp.eq.s32.totalorder %s24, 0
      %p233 = por %p231, %p232
      %s234 = sadd.s32 %s25, %s26
      %s235 = sadd.s32 %s37, %s33
      %s236 = ssub.s32 %s234, %s235
      %p237 = scmp.eq.s32.totalorder %s236, 0
      %s239 = sadd.s32 %s238, 1
      %s240 = scalar_select %p237, %s238, %s239
      %p243 = pneg %p237
      %p244 = scmp.eq.s32.totalorder %s18, 1
      %p245 = por %p243, %p244
      %p246 = scmp.ne.s32.totalorder %s238, %s241
      %p247 = scmp.eq.s32.totalorder %s18, 0
      %p248 = por %p246, %p247
      %p249 = scmp.ne.s32.totalorder %s238, %s241
      %p250 = scmp.eq.s32.totalorder %s23, 1
      %p251 = por %p249, %p250
      %p252 = scmp.ne.s32.totalorder %s241, %s242
      %p253 = scmp.eq.s32.totalorder %s23, 0
      %p254 = por %p252, %p253
      %p255 = scmp.ne.s32.totalorder %s241, %s242
      %p256 = scmp.eq.s32.totalorder %s24, 1
      %p257 = por %p255, %p256
      %p259 = scmp.ne.s32.totalorder %s242, %s258
      %p260 = scmp.eq.s32.totalorder %s24, 0
      %p261 = por %p259, %p260
      %s262 = sadd.s32 %s25, %s26
      %s263 = sadd.s32 %s37, %s33
      %s264 = ssub.s32 %s262, %s263
      %p265 = scmp.eq.s32.totalorder %s264, 0
      %s267 = sadd.s32 %s266, 1
      %s268 = scalar_select %p265, %s266, %s267
      %p271 = pneg %p265
      %p272 = scmp.eq.s32.totalorder %s18, 1
      %p273 = por %p271, %p272
      %p274 = scmp.ne.s32.totalorder %s266, %s269
      %p275 = scmp.eq.s32.totalorder %s18, 0
      %p276 = por %p274, %p275
      %p277 = scmp.ne.s32.totalorder %s266, %s269
      %p278 = scmp.eq.s32.totalorder %s23, 1
      %p279 = por %p277, %p278
      %p280 = scmp.ne.s32.totalorder %s269, %s270
      %p281 = scmp.eq.s32.totalorder %s23, 0
      %p282 = por %p280, %p281
      %p283 = scmp.ne.s32.totalorder %s269, %s270
      %p284 = scmp.eq.s32.totalorder %s24, 1
      %p285 = por %p283, %p284
      %p287 = scmp.ne.s32.totalorder %s270, %s286
      %p288 = scmp.eq.s32.totalorder %s24, 0
      %p289 = por %p287, %p288
      %p290 = scmp.le.s32.totalorder 1, %s18
      %p291 = scmp.lt.s32.totalorder %s18, 3
      %p292 = pnand %p290, %p291
      %p293 = pneg %p292
      // Predicated region
      $region9: #{forward_train.1} parent=5 // pred_check
        _
      $region10: #{forward_train.1} parent=5 // pred_check_branch
        %295 = sbr.rel (%p292) target = $region12
      $region11: #{forward_train.1} parent=5 // pred_region
        %s296 = ssub.s32 %s18, 1
        // Predicated region
        $region13: #{forward_train.1} parent=11 // pred_check
          %p297 = pneg %p51
        $region14: #{forward_train.1} parent=11 // pred_check_branch
          %299 = sbr.rel (%p297) target = $region16
        $region15: #{forward_train.1} parent=11 // pred_region
          %s301 = ssub.s32 16, 16
          %302 = vsyncadd [#allocation3], %s301
          %s304 = sshll.u32 %s0, 4
          %s305 = int_to_ptr.vmem [resolvable:$true] %s304
          %307 = dma.vmem_to_smem %s305, 16, [#allocation2], [#allocation3]
        $region16: #{forward_train.1} parent=11 // pred_fallthru
          _
        // Predicated region
        $region17: #{forward_train.1} parent=11 // pred_check
          %p308 = pneg %p72
        $region18: #{forward_train.1} parent=11 // pred_check_branch
          %310 = sbr.rel (%p308) target = $region20
        $region19: #{forward_train.1} parent=11 // pred_region
          %s312 = ssub.s32 16, 16
          %313 = vsyncadd [#allocation5], %s312
          %s315 = sshll.u32 %s1, 4
          %s316 = int_to_ptr.vmem [resolvable:$true] %s315
          %318 = dma.vmem_to_smem %s316, 16, [#allocation4], [#allocation5]
        $region20: #{forward_train.1} parent=11 // pred_fallthru
          _
        // Predicated region
        $region21: #{forward_train.1} parent=11 // pred_check
          %p319 = pneg %p177
        $region22: #{forward_train.1} parent=11 // pred_check_branch
          %321 = sbr.rel (%p319) target = $region24
        $region23: #{forward_train.1} parent=11 // pred_region
          _
        $region24: #{forward_train.1} parent=11 // pred_fallthru
          _
        // Predicated region
        $region25: #{forward_train.1} parent=11 // pred_check
          %p322 = pneg %p198
        $region26: #{forward_train.1} parent=11 // pred_check_branch
          %324 = sbr.rel (%p322) target = $region28
        $region27: #{forward_train.1} parent=11 // pred_region
          _
        $region28: #{forward_train.1} parent=11 // pred_fallthru
          _
      $region12: #{forward_train.1} parent=5 // pred_fallthru
        _
      %p325 = scmp.lt.s32.totalorder %s18, 2
      // Predicated region
      $region29: #{forward_train.1} parent=5 // pred_check
        %p326 = pneg %p325
      $region30: #{forward_train.1} parent=5 // pred_check_branch
        %328 = sbr.rel (%p326) target = $region32
      $region31: #{forward_train.1} parent=5 // pred_region
        // Predicated region
        $region33: #{forward_train.1} parent=31 // pred_check
          %p329 = pneg %p94
        $region34: #{forward_train.1} parent=31 // pred_check_branch
          %331 = sbr.rel (%p329) target = $region36
        $region35: #{forward_train.1} parent=31 // pred_region
          %s332 = smul.u32 2, %s26
          %p333 = scmp.lt.s32.totalorder %s25, 1
          %s334 = scalar_select %p333, %s25, 1
          %p335 = scmp.lt.s32.totalorder %s332, 1
          %s336 = scalar_select %p335, %s332, 1
          %s337 = smul.addr %s334, 2
          %s338 = sadd.s32 %s336, %s337
          %s339 = smul.addr %s338, 2
          %s340 = scalar_lea.vmem %s2, %s339
          %s341 = smul.u32 2, %s26
        $region36: #{forward_train.1} parent=31 // pred_fallthru
          _
        // Predicated region
        $region37: #{forward_train.1} parent=31 // pred_check
          %p342 = pneg %p122
        $region38: #{forward_train.1} parent=31 // pred_check_branch
          %344 = sbr.rel (%p342) target = $region40
        $region39: #{forward_train.1} parent=31 // pred_region
          %s345 = smul.u32 2, %s26
          %p346 = scmp.lt.s32.totalorder %s25, 1
          %s347 = scalar_select %p346, %s25, 1
          %p348 = scmp.lt.s32.totalorder %s345, 1
          %s349 = scalar_select %p348, %s345, 1
          %s350 = smul.addr %s347, 2
          %s351 = sadd.s32 %s349, %s350
          %s352 = smul.addr %s351, 2
          %s353 = scalar_lea.vmem %s3, %s352
          %s354 = smul.u32 2, %s26
        $region40: #{forward_train.1} parent=31 // pred_fallthru
          _
        // Predicated region
        $region41: #{forward_train.1} parent=31 // pred_check
          %p355 = pneg %p150
        $region42: #{forward_train.1} parent=31 // pred_check_branch
          %357 = sbr.rel (%p355) target = $region44
        $region43: #{forward_train.1} parent=31 // pred_region
          %s358 = smul.u32 2, %s26
          %p359 = scmp.lt.s32.totalorder %s25, 1
          %s360 = scalar_select %p359, %s25, 1
          %p361 = scmp.lt.s32.totalorder %s358, 1
          %s362 = scalar_select %p361, %s358, 1
          %s363 = smul.addr %s360, 2
          %s364 = sadd.s32 %s362, %s363
          %s365 = scalar_lea.vmem %s4, %s364
          %s366 = smul.u32 2, %s26
        $region44: #{forward_train.1} parent=31 // pred_fallthru
          _
      $region32: #{forward_train.1} parent=5 // pred_fallthru
        _
      %p367 = scmp.le.s32.totalorder 1, %s18
      %p368 = scmp.lt.s32.totalorder %s18, 3
      %p369 = pnand %p367, %p368
      %p370 = pneg %p369
      // Predicated region
      $region45: #{forward_train.1} parent=5 // pred_check
        _
      $region46: #{forward_train.1} parent=5 // pred_check_branch
        %372 = sbr.rel (%p369) target = $region48
      $region47: #{forward_train.1} parent=5 // pred_region
        %s373 = ssub.s32 %s18, 1
        // Predicated region
        $region49: #{forward_train.1} parent=47 // pred_check
          %p374 = pneg %p51
        $region50: #{forward_train.1} parent=47 // pred_check_branch
          %376 = sbr.rel (%p374) target = $region52
        $region51: #{forward_train.1} parent=47 // pred_region
          %377 = dma.done [#allocation3], 16
        $region52: #{forward_train.1} parent=47 // pred_fallthru
          _
        // Predicated region
        $region53: #{forward_train.1} parent=47 // pred_check
          %p378 = pneg %p72
        $region54: #{forward_train.1} parent=47 // pred_check_branch
          %380 = sbr.rel (%p378) target = $region56
        $region55: #{forward_train.1} parent=47 // pred_region
          %381 = dma.done [#allocation5], 16
        $region56: #{forward_train.1} parent=47 // pred_fallthru
          _
        %382 = sfence
        %p383 = pneg %p51
        %p384 = pneg %p48
        %p385 = pneg %p72
        %p386 = pneg %p69
        %s387 = smul.u32 2, %s28
        %p388 = scmp.lt.s32.totalorder %s27, 1
        %s389 = scalar_select %p388, %s27, 1
        %p390 = scmp.lt.s32.totalorder %s387, 1
        %s391 = scalar_select %p390, %s387, 1
        %s392 = smul.addr %s389, 2
        %s393 = sadd.s32 %s391, %s392
        %s394 = smul.addr %s393, 2
        %s395 = scalar_lea.vmem %s2, %s394
        %p396 = pneg %p100
        %p397 = pneg %p97
        %s398 = smul.u32 2, %s28
        %p399 = scmp.lt.s32.totalorder %s27, 1
        %s400 = scalar_select %p399, %s27, 1
        %p401 = scmp.lt.s32.totalorder %s398, 1
        %s402 = scalar_select %p401, %s398, 1
        %s403 = smul.addr %s400, 2
        %s404 = sadd.s32 %s402, %s403
        %s405 = smul.addr %s404, 2
        %s406 = scalar_lea.vmem %s3, %s405
        %p407 = pneg %p128
        %p408 = pneg %p125
        %s409 = smul.u32 2, %s28
        %p410 = scmp.lt.s32.totalorder %s27, 1
        %s411 = scalar_select %p410, %s27, 1
        %p412 = scmp.lt.s32.totalorder %s409, 1
        %s413 = scalar_select %p412, %s409, 1
        %s414 = smul.addr %s411, 2
        %s415 = sadd.s32 %s413, %s414
        %s416 = scalar_lea.vmem %s4, %s415
        %p417 = pneg %p156
        %p418 = pneg %p153
        %p419 = pneg %p177
        %p420 = pneg %p174
        %p421 = pneg %p198
        %p422 = pneg %p195
        %p423 = pneg %p226
        %p424 = pneg %p223
        %s425 = sadd.s32 %s27, %s28
        %p426 = scmp.lt.s32.totalorder %s425, 1
        %s427 = scalar_select %p426, %s425, 1
        %s428 = scalar_lea.vmem %s7, %s427
        %p429 = pneg %p254
        %p430 = pneg %p251
        %s431 = sadd.s32 %s27, %s28
        %p432 = scmp.lt.s32.totalorder %s431, 1
        %s433 = scalar_select %p432, %s431, 1
        %s434 = scalar_lea.vmem %s8, %s433
        %p435 = pneg %p282
        %p436 = pneg %p279
        %s437 = sadd.s32 %s27, %s28
        %p438 = scmp.lt.s32.totalorder %s437, 1
        %s439 = scalar_select %p438, %s437, 1
        %s440 = scalar_lea.vmem %s9, %s439
        %s441 = smul.u32 2, %s28
        %p442 = scmp.lt.s32.totalorder %s27, 1
        %s443 = scalar_select %p442, %s27, 1
        %p444 = scmp.lt.s32.totalorder %s441, 1
        %s445 = scalar_select %p444, %s441, 1
        %s446 = smul.addr %s443, 2
        %s447 = sadd.s32 %s445, %s446
        %s448 = smul.addr %s447, 2
        %s449 = scalar_lea.vmem %s2, %s448
        %s450 = smul.u32 2, %s28
        %s451 = smul.u32 2, %s28
        %p452 = scmp.lt.s32.totalorder %s27, 1
        %s453 = scalar_select %p452, %s27, 1
        %p454 = scmp.lt.s32.totalorder %s451, 1
        %s455 = scalar_select %p454, %s451, 1
        %s456 = smul.addr %s453, 2
        %s457 = sadd.s32 %s455, %s456
        %s458 = smul.addr %s457, 2
        %s459 = scalar_lea.vmem %s3, %s458
        %s460 = smul.u32 2, %s28
        %s461 = smul.u32 2, %s28
        %p462 = scmp.lt.s32.totalorder %s27, 1
        %s463 = scalar_select %p462, %s27, 1
        %p464 = scmp.lt.s32.totalorder %s461, 1
        %s465 = scalar_select %p464, %s461, 1
        %s466 = smul.addr %s463, 2
        %s467 = sadd.s32 %s465, %s466
        %s468 = scalar_lea.vmem %s4, %s467
        %s469 = smul.u32 2, %s28
        %s470 = sadd.s32 %s27, %s28
        %p471 = scmp.lt.s32.totalorder %s470, 1
        %s472 = scalar_select %p471, %s470, 1
        %s473 = scalar_lea.vmem %s7, %s472
        %s474 = sadd.s32 %s27, %s28
        %s475 = sadd.s32 %s27, %s28
        %p476 = scmp.lt.s32.totalorder %s475, 1
        %s477 = scalar_select %p476, %s475, 1
        %s478 = scalar_lea.vmem %s8, %s477
        %s479 = sadd.s32 %s27, %s28
        %s480 = sadd.s32 %s27, %s28
        %p481 = scmp.lt.s32.totalorder %s480, 1
        %s482 = scalar_select %p481, %s480, 1
        %s483 = scalar_lea.vmem %s9, %s482
        %s484 = sadd.s32 %s27, %s28
        %v486 = vld [vmem:[%s449] sm:$0xf]
        %v487 = vld [vmem:[%s459] sm:$0xf]
        %v488 = vld [vmem:[%s468] sm:$0x3]
        %v489 = vld [vmem:[%s5] sm:$0xf]
        %v490 = vld [vmem:[%s5 + $0x4] sm:$0xf]
        %v491 = vld [vmem:[%s6] sm:$0xff]
        %v492 = vld [vmem:[%s6 + $0x8] sm:$0xff]
        %s493 = sld [smem:[#allocation2 + %s27]]
        %s494 = sld [smem:[#allocation4 + %s27]]
        %s495 = sadd.f32 %s493, %s494
        %s496 = smul.f32 %s495, 0.5
        %v497 = vand.u32 %v488, 511
        %v498 = vshra.s32 %v488, 9
        %v499 = vand.u32 %v498, 511
        %v500 = vshra.s32 %v488, 18
        %v501 = vand.u32 %v500, 1
        %v502 = vcvt.s32.f32 %v501
        %v503 = vshra.s32 %v488, 19
        %v504 = vand.u32 %v503, 1
        %v505 = vcvt.s32.f32 %v504
        %507 = vset.pattern.permute.xlu0 0
        %508 = vperm.xlu0 %507, %v491
        %v509 = vpop.permute.xlu0 %508
        %512 = vset.pattern.permute.xlu0 0
        %513 = vperm.xlu0 %512, %v492
        %v514 = vpop.permute.xlu0 %513
        %v518 = vunpack.c.l.b16 %v489
        %v519 = vunpack.c.l.b16 %v490
        %v520 = vpack.c.b16 %v519, %v518
        %v523 = vunpack.c.l.s4 1983009808
        %v524 = vunpack.c.0.s8 %v523
        %v525 = vlaneseq
        %v526 = vshrl.u32 %v525, 7
        %v527 = vsub.s32 %v524, %v526
        %v528 = vrot.slane %v486, %v527
        %v529 = vcombine.high %v528, %v528
        %vm530 = vcmask 23552
        %v532 = vsel %vm530, %v520, 0
        %vm534 = vcmask 1040384
        %vm535 = vcmask 1041408
        %v536 = vsel %vm534, 4294967295, 65535
        %v537 = vsel %vm535, %v536, 0
        %v539 = vand.u32 %v528, %v537
        %v542 = vand.u32 %v529, %v537
        %544 = vmatprep.subr.bf16.mxu0 0
        %545 = vmatpush1.bf16.msra.mxu0 0
        %546 = vmatprep.subr.bf16.mxu0 0
        %547 = vmatpush1.bf16.msra.mxu0 0
        %548 = vmatprep.subr.bf16.mxu0 0
        %549 = vmatpush1.bf16.msra.mxu0 0
        %550 = vmatprep.subr.bf16.mxu0 0
        %551 = vmatpush1.bf16.msra.mxu0 0
        %552 = vmatprep.subr.bf16.mxu0 0
        %553 = vmatpush1.bf16.msra.mxu0 0
        %554 = vmatprep.subr.bf16.mxu0 0
        %555 = vmatpush1.bf16.msra.mxu0 0
        %556 = vmatprep.subr.bf16.mxu0 0
        %557 = vmatpush1.bf16.msra.mxu0 0
        %558 = vmatprep.subr.bf16.mxu0 %v542
        %559 = vmatpush1.bf16.msra.mxu0 %v539
        %560 = vmatprep.subr.bf16.mxu0 0
        %561 = vmatpush2.bf16.msra.mxu0 0
        %562 = vmatprep.subr.bf16.mxu0 0
        %563 = vmatpush2.bf16.msra.mxu0 0
        %564 = vmatprep.subr.bf16.mxu0 0
        %565 = vmatpush2.bf16.msra.mxu0 0
        %566 = vmatprep.subr.bf16.mxu0 0
        %567 = vmatpush2.bf16.msra.mxu0 0
        %568 = vmatprep.subr.bf16.mxu0 0
        %569 = vmatpush2.bf16.msra.mxu0 0
        %570 = vmatprep.subr.bf16.mxu0 0
        %571 = vmatpush2.bf16.msra.mxu0 0
        %572 = vmatprep.subr.bf16.mxu0 0
        %573 = vmatpush2.bf16.msra.mxu0 0
        %574 = vmatprep.subr.bf16.mxu0 0
        %575 = vmatpush2.bf16.msra.mxu0 0
        %576 = vmatprep.mubr.bf16.mxu0 0
        %577 = vmatmul.mubr.bf16.gmra.mxu0 %v532
        %v578 = vpop.f32.mrf.mxu0
        %v579 = vadd.f32 %v509, %v578
        %v580 = vpop.f32.mrf.mxu0
        %v581 = vadd.f32 %v509, %v580
        %v582 = vpop.f32.mrf.mxu0
        %v583 = vadd.f32 %v514, %v582
        %v584 = vpop.f32.mrf.mxu0
        %v585 = vadd.f32 %v514, %v584
        %586 = vdwg.mxu0
        %v589 = vunpack.c.l.s4 1983009808
        %v590 = vunpack.c.0.s8 %v589
        %v591 = vlaneseq
        %v592 = vshrl.u32 %v591, 7
        %v593 = vsub.s32 %v590, %v592
        %v594 = vrot.slane %v487, %v593
        %v595 = vcombine.high %v594, %v594
        %v597 = vand.u32 %v594, %v537
        %v600 = vand.u32 %v595, %v537
        %602 = vmatprep.subr.bf16.mxu0 0
        %603 = vmatpush1.bf16.msra.mxu0 0
        %604 = vmatprep.subr.bf16.mxu0 0
        %605 = vmatpush1.bf16.msra.mxu0 0
        %606 = vmatprep.subr.bf16.mxu0 0
        %607 = vmatpush1.bf16.msra.mxu0 0
        %608 = vmatprep.subr.bf16.mxu0 0
        %609 = vmatpush1.bf16.msra.mxu0 0
        %610 = vmatprep.subr.bf16.mxu0 0
        %611 = vmatpush1.bf16.msra.mxu0 0
        %612 = vmatprep.subr.bf16.mxu0 0
        %613 = vmatpush1.bf16.msra.mxu0 0
        %614 = vmatprep.subr.bf16.mxu0 0
        %615 = vmatpush1.bf16.msra.mxu0 0
        %616 = vmatprep.subr.bf16.mxu0 %v600
        %617 = vmatpush1.bf16.msra.mxu0 %v597
        %618 = vmatprep.subr.bf16.mxu0 0
        %619 = vmatpush2.bf16.msra.mxu0 0
        %620 = vmatprep.subr.bf16.mxu0 0
        %621 = vmatpush2.bf16.msra.mxu0 0
        %622 = vmatprep.subr.bf16.mxu0 0
        %623 = vmatpush2.bf16.msra.mxu0 0
        %624 = vmatprep.subr.bf16.mxu0 0
        %625 = vmatpush2.bf16.msra.mxu0 0
        %626 = vmatprep.subr.bf16.mxu0 0
        %627 = vmatpush2.bf16.msra.mxu0 0
        %628 = vmatprep.subr.bf16.mxu0 0
        %629 = vmatpush2.bf16.msra.mxu0 0
        %630 = vmatprep.subr.bf16.mxu0 0
        %631 = vmatpush2.bf16.msra.mxu0 0
        %632 = vmatprep.subr.bf16.mxu0 0
        %633 = vmatpush2.bf16.msra.mxu0 0
        %634 = vmatprep.mubr.bf16.mxu0 0
        %635 = vmatmul.mubr.bf16.gmra.mxu0 %v532
        %v636 = vpop.f32.mrf.mxu0
        %v637 = vadd.f32 %v509, %v636
        %v638 = vpop.f32.mrf.mxu0
        %v639 = vadd.f32 %v509, %v638
        %v640 = vpop.f32.mrf.mxu0
        %v641 = vadd.f32 %v514, %v640
        %v642 = vpop.f32.mrf.mxu0
        %v643 = vadd.f32 %v514, %v642
        %644 = vdwg.mxu0
        %v645 = vsub.f32 %v637, %v579
        %v646 = vsub.f32 %v639, %v581
        %v647 = vsub.f32 %v641, %v583
        %v648 = vsub.f32 %v643, %v585
        %v650 = vlaneseq
        %v651 = vshrl.u32 %v650, 7
        %v652 = vsub.s32 0, %v651
        %v653 = vrot.slane %v502, %v652
        %v654 = vlaneseq
        %v655 = vshrl.u32 %v654, 7
        %v656 = vsub.s32 1, %v655
        %v657 = vrot.slane %v502, %v656
        %v660 = vmul.f32 %v653, %v645
        %v661 = vmul.f32 %v657, %v646
        %v662 = vmul.f32 %v653, %v647
        %v663 = vmul.f32 %v657, %v648
        %v664 = vadd.f32 %v579, %v660
        %v665 = vadd.f32 %v581, %v661
        %v666 = vadd.f32 %v583, %v662
        %v667 = vadd.f32 %v585, %v663
        %v668 = vlaneseq
        %v669 = vshrl.u32 %v668, 7
        %v670 = vrot.slane %v579, 4
        %v671 = vmax.f32 %v579, %v670
        %v672 = vrot.slane %v671, 2
        %v673 = vmax.f32 %v671, %v672
        %v674 = vrot.slane %v673, 1
        %v675 = vmax.f32 %v673, %v674
        %v676 = vrot.slane %v581, 4
        %v677 = vmax.f32 %v581, %v676
        %v678 = vrot.slane %v677, 2
        %v679 = vmax.f32 %v677, %v678
        %v680 = vrot.slane %v679, 1
        %v681 = vmax.f32 %v679, %v680
        %v682 = vrot.slane %v583, 4
        %v683 = vmax.f32 %v583, %v682
        %v684 = vrot.slane %v683, 2
        %v685 = vmax.f32 %v683, %v684
        %v686 = vrot.slane %v685, 1
        %v687 = vmax.f32 %v685, %v686
        %v688 = vrot.slane %v585, 4
        %v689 = vmax.f32 %v585, %v688
        %v690 = vrot.slane %v689, 2
        %v691 = vmax.f32 %v689, %v690
        %v692 = vrot.slane %v691, 1
        %v693 = vmax.f32 %v691, %v692
        %v694 = vrot.slane %v637, 4
        %v695 = vmax.f32 %v637, %v694
        %v696 = vrot.slane %v695, 2
        %v697 = vmax.f32 %v695, %v696
        %v698 = vrot.slane %v697, 1
        %v699 = vmax.f32 %v697, %v698
        %v700 = vrot.slane %v639, 4
        %v701 = vmax.f32 %v639, %v700
        %v702 = vrot.slane %v701, 2
        %v703 = vmax.f32 %v701, %v702
        %v704 = vrot.slane %v703, 1
        %v705 = vmax.f32 %v703, %v704
        %v706 = vrot.slane %v641, 4
        %v707 = vmax.f32 %v641, %v706
        %v708 = vrot.slane %v707, 2
        %v709 = vmax.f32 %v707, %v708
        %v710 = vrot.slane %v709, 1
        %v711 = vmax.f32 %v709, %v710
        %v712 = vrot.slane %v643, 4
        %v713 = vmax.f32 %v643, %v712
        %v714 = vrot.slane %v713, 2
        %v715 = vmax.f32 %v713, %v714
        %v716 = vrot.slane %v715, 1
        %v717 = vmax.f32 %v715, %v716
        %v718 = vrot.slane %v664, 4
        %v719 = vmax.f32 %v664, %v718
        %v720 = vrot.slane %v719, 2
        %v721 = vmax.f32 %v719, %v720
        %v722 = vrot.slane %v721, 1
        %v723 = vmax.f32 %v721, %v722
        %v724 = vrot.slane %v665, 4
        %v725 = vmax.f32 %v665, %v724
        %v726 = vrot.slane %v725, 2
        %v727 = vmax.f32 %v725, %v726
        %v728 = vrot.slane %v727, 1
        %v729 = vmax.f32 %v727, %v728
        %v730 = vrot.slane %v666, 4
        %v731 = vmax.f32 %v666, %v730
        %v732 = vrot.slane %v731, 2
        %v733 = vmax.f32 %v731, %v732
        %v734 = vrot.slane %v733, 1
        %v735 = vmax.f32 %v733, %v734
        %v736 = vrot.slane %v667, 4
        %v737 = vmax.f32 %v667, %v736
        %v738 = vrot.slane %v737, 2
        %v739 = vmax.f32 %v737, %v738
        %v740 = vrot.slane %v739, 1
        %v741 = vmax.f32 %v739, %v740
        %vm742 = vcmp.eq.f32.partialorder %v664, %v723
        %vm743 = vcmp.eq.f32.partialorder %v665, %v729
        %v744 = vsel %vm742, %v669, 8
        %v745 = vsel %vm743, %v669, 8
        %v746 = vrot.slane %v744, 4
        %vm747 = vcmp.lt.s32.totalorder %v744, %v746
        %v748 = vsel %vm747, %v744, %v746
        %v749 = vrot.slane %v748, 2
        %vm750 = vcmp.lt.s32.totalorder %v748, %v749
        %v751 = vsel %vm750, %v748, %v749
        %v752 = vrot.slane %v751, 1
        %vm753 = vcmp.lt.s32.totalorder %v751, %v752
        %v754 = vsel %vm753, %v751, %v752
        %v755 = vrot.slane %v745, 4
        %vm756 = vcmp.lt.s32.totalorder %v745, %v755
        %v757 = vsel %vm756, %v745, %v755
        %v758 = vrot.slane %v757, 2
        %vm759 = vcmp.lt.s32.totalorder %v757, %v758
        %v760 = vsel %vm759, %v757, %v758
        %v761 = vrot.slane %v760, 1
        %vm762 = vcmp.lt.s32.totalorder %v760, %v761
        %v763 = vsel %vm762, %v760, %v761
        %vm764 = vcmp.eq.f32.partialorder %v666, %v735
        %vm765 = vcmp.eq.f32.partialorder %v667, %v741
        %v766 = vsel %vm764, %v669, 8
        %v767 = vsel %vm765, %v669, 8
        %v768 = vrot.slane %v766, 4
        %vm769 = vcmp.lt.s32.totalorder %v766, %v768
        %v770 = vsel %vm769, %v766, %v768
        %v771 = vrot.slane %v770, 2
        %vm772 = vcmp.lt.s32.totalorder %v770, %v771
        %v773 = vsel %vm772, %v770, %v771
        %v774 = vrot.slane %v773, 1
        %vm775 = vcmp.lt.s32.totalorder %v773, %v774
        %v776 = vsel %vm775, %v773, %v774
        %v777 = vrot.slane %v767, 4
        %vm778 = vcmp.lt.s32.totalorder %v767, %v777
        %v779 = vsel %vm778, %v767, %v777
        %v780 = vrot.slane %v779, 2
        %vm781 = vcmp.lt.s32.totalorder %v779, %v780
        %v782 = vsel %vm781, %v779, %v780
        %v783 = vrot.slane %v782, 1
        %vm784 = vcmp.lt.s32.totalorder %v782, %v783
        %v785 = vsel %vm784, %v782, %v783
        %v786 = vlaneseq
        %v787 = vshrl.u32 %v786, 7
        %v788 = vsub.s32 0, %v787
        %v789 = vrot.slane %v497, %v788
        %v790 = vlaneseq
        %v791 = vshrl.u32 %v790, 7
        %v792 = vsub.s32 1, %v791
        %v793 = vrot.slane %v497, %v792
        %vm794 = vcmp.eq.s32.totalorder %v669, %v789
        %vm795 = vcmp.eq.s32.totalorder %v669, %v793
        %v796 = vsel %vm794, 1, 0
        %v797 = vsel %vm795, 1, 0
        %v798 = vcvt.s32.f32 %v796
        %v799 = vcvt.s32.f32 %v797
        %v800 = vlaneseq
        %v801 = vshrl.u32 %v800, 7
        %v802 = vsub.s32 0, %v801
        %v803 = vrot.slane %v499, %v802
        %v804 = vlaneseq
        %v805 = vshrl.u32 %v804, 7
        %v806 = vsub.s32 1, %v805
        %v807 = vrot.slane %v499, %v806
        %vm808 = vcmp.eq.s32.totalorder %v669, %v803
        %vm809 = vcmp.eq.s32.totalorder %v669, %v807
        %v810 = vsel %vm808, 1, 0
        %v811 = vsel %vm809, 1, 0
        %v812 = vcvt.s32.f32 %v810
        %v813 = vcvt.s32.f32 %v811
        %vm814 = vcmp.eq.s32.totalorder %v669, %v754
        %vm815 = vcmp.eq.s32.totalorder %v669, %v763
        %v816 = vsel %vm814, 1, 0
        %v817 = vsel %vm815, 1, 0
        %v818 = vcvt.s32.f32 %v816
        %v819 = vcvt.s32.f32 %v817
        %vm820 = vcmp.eq.s32.totalorder %v669, %v776
        %vm821 = vcmp.eq.s32.totalorder %v669, %v785
        %v822 = vsel %vm820, 1, 0
        %v823 = vsel %vm821, 1, 0
        %v824 = vcvt.s32.f32 %v822
        %v825 = vcvt.s32.f32 %v823
        %v826 = vsub.f32 %v579, %v675
        %v827 = vsub.f32 %v581, %v681
        %v828 = vmul.f32 %v826, 1.442695
        %v829 = vpow.pop %v828
        %v830 = vmul.f32 %v827, 1.442695
        %v831 = vpow.pop %v830
        %vm832 = vcmask 64512
        %v834 = vsel %vm832, 1.0, 0
        %836 = vmatprep.subr.mxu0 0.0
        %837 = vmatpush1.msra.mxu0 0.0
        %838 = vmatprep.subr.mxu0 0.0
        %839 = vmatpush1.msra.mxu0 0.0
        %840 = vmatprep.subr.mxu0 0.0
        %841 = vmatpush1.msra.mxu0 0.0
        %842 = vmatprep.subr.mxu0 0.0
        %843 = vmatpush1.msra.mxu0 0.0
        %844 = vmatprep.subr.mxu0 0.0
        %845 = vmatpush1.msra.mxu0 0.0
        %846 = vmatprep.subr.mxu0 0.0
        %847 = vmatpush1.msra.mxu0 0.0
        %848 = vmatprep.subr.mxu0 0.0
        %849 = vmatpush1.msra.mxu0 0.0
        %850 = vmatprep.subr.mxu0 0.0
        %851 = vmatpush1.msra.mxu0 0.0
        %852 = vmatprep.subr.mxu0 0.0
        %853 = vmatpush1.msra.mxu0 0.0
        %854 = vmatprep.subr.mxu0 0.0
        %855 = vmatpush1.msra.mxu0 0.0
        %856 = vmatprep.subr.mxu0 0.0
        %857 = vmatpush1.msra.mxu0 0.0
        %858 = vmatprep.subr.mxu0 0.0
        %859 = vmatpush1.msra.mxu0 0.0
        %860 = vmatprep.subr.mxu0 0.0
        %861 = vmatpush1.msra.mxu0 0.0
        %862 = vmatprep.subr.mxu0 0.0
        %863 = vmatpush1.msra.mxu0 0.0
        %864 = vmatprep.subr.mxu0 0.0
        %865 = vmatpush1.msra.mxu0 0.0
        %866 = vmatprep.subr.mxu0 %v831
        %867 = vmatpush1.msra.mxu0 %v829
        %868 = vmatprep.subr.mxu0 0.0
        %869 = vmatpush2.msra.mxu0 0.0
        %870 = vmatprep.subr.mxu0 0.0
        %871 = vmatpush2.msra.mxu0 0.0
        %872 = vmatprep.subr.mxu0 0.0
        %873 = vmatpush2.msra.mxu0 0.0
        %874 = vmatprep.subr.mxu0 0.0
        %875 = vmatpush2.msra.mxu0 0.0
        %876 = vmatprep.subr.mxu0 0.0
        %877 = vmatpush2.msra.mxu0 0.0
        %878 = vmatprep.subr.mxu0 0.0
        %879 = vmatpush2.msra.mxu0 0.0
        %880 = vmatprep.subr.mxu0 0.0
        %881 = vmatpush2.msra.mxu0 0.0
        %882 = vmatprep.subr.mxu0 0.0
        %883 = vmatpush2.msra.mxu0 0.0
        %884 = vmatprep.subr.mxu0 0.0
        %885 = vmatpush2.msra.mxu0 0.0
        %886 = vmatprep.subr.mxu0 0.0
        %887 = vmatpush2.msra.mxu0 0.0
        %888 = vmatprep.subr.mxu0 0.0
        %889 = vmatpush2.msra.mxu0 0.0
        %890 = vmatprep.subr.mxu0 0.0
        %891 = vmatpush2.msra.mxu0 0.0
        %892 = vmatprep.subr.mxu0 0.0
        %893 = vmatpush2.msra.mxu0 0.0
        %894 = vmatprep.subr.mxu0 0.0
        %895 = vmatpush2.msra.mxu0 0.0
        %896 = vmatprep.subr.mxu0 0.0
        %897 = vmatpush2.msra.mxu0 0.0
        %898 = vmatprep.subr.mxu0 0.0
        %899 = vmatpush2.msra.mxu0 0.0
        %900 = vmatprep.mubr.f32.mxu0 0.0
        %901 = vmatmul.mubr.f32.gmra.mxu0 %v834
        %v902 = vpop.f32.mrf.mxu0
        %v903 = vadd.f32 0.0, %v902
        %v904 = vpop.f32.mrf.mxu0
        %v905 = vadd.f32 0.0, %v904
        %906 = vdwg.mxu0
        %v907 = vlog2.pop %v903
        %v908 = vmul.f32 %v907, 0.6931472
        %v909 = vlog2.pop %v905
        %v910 = vmul.f32 %v909, 0.6931472
        %v911 = vadd.f32 %v675, %v908
        %v912 = vadd.f32 %v681, %v910
        %v913 = vsub.f32 %v583, %v687
        %v914 = vsub.f32 %v585, %v693
        %v915 = vmul.f32 %v913, 1.442695
        %v916 = vpow.pop %v915
        %v917 = vmul.f32 %v914, 1.442695
        %v918 = vpow.pop %v917
        %919 = vmatprep.subr.mxu0 0.0
        %920 = vmatpush1.msra.mxu0 0.0
        %921 = vmatprep.subr.mxu0 0.0
        %922 = vmatpush1.msra.mxu0 0.0
        %923 = vmatprep.subr.mxu0 0.0
        %924 = vmatpush1.msra.mxu0 0.0
        %925 = vmatprep.subr.mxu0 0.0
        %926 = vmatpush1.msra.mxu0 0.0
        %927 = vmatprep.subr.mxu0 0.0
        %928 = vmatpush1.msra.mxu0 0.0
        %929 = vmatprep.subr.mxu0 0.0
        %930 = vmatpush1.msra.mxu0 0.0
        %931 = vmatprep.subr.mxu0 0.0
        %932 = vmatpush1.msra.mxu0 0.0
        %933 = vmatprep.subr.mxu0 0.0
        %934 = vmatpush1.msra.mxu0 0.0
        %935 = vmatprep.subr.mxu0 0.0
        %936 = vmatpush1.msra.mxu0 0.0
        %937 = vmatprep.subr.mxu0 0.0
        %938 = vmatpush1.msra.mxu0 0.0
        %939 = vmatprep.subr.mxu0 0.0
        %940 = vmatpush1.msra.mxu0 0.0
        %941 = vmatprep.subr.mxu0 0.0
        %942 = vmatpush1.msra.mxu0 0.0
        %943 = vmatprep.subr.mxu0 0.0
        %944 = vmatpush1.msra.mxu0 0.0
        %945 = vmatprep.subr.mxu0 0.0
        %946 = vmatpush1.msra.mxu0 0.0
        %947 = vmatprep.subr.mxu0 0.0
        %948 = vmatpush1.msra.mxu0 0.0
        %949 = vmatprep.subr.mxu0 %v918
        %950 = vmatpush1.msra.mxu0 %v916
        %951 = vmatprep.subr.mxu0 0.0
        %952 = vmatpush2.msra.mxu0 0.0
        %953 = vmatprep.subr.mxu0 0.0
        %954 = vmatpush2.msra.mxu0 0.0
        %955 = vmatprep.subr.mxu0 0.0
        %956 = vmatpush2.msra.mxu0 0.0
        %957 = vmatprep.subr.mxu0 0.0
        %958 = vmatpush2.msra.mxu0 0.0
        %959 = vmatprep.subr.mxu0 0.0
        %960 = vmatpush2.msra.mxu0 0.0
        %961 = vmatprep.subr.mxu0 0.0
        %962 = vmatpush2.msra.mxu0 0.0
        %963 = vmatprep.subr.mxu0 0.0
        %964 = vmatpush2.msra.mxu0 0.0
        %965 = vmatprep.subr.mxu0 0.0
        %966 = vmatpush2.msra.mxu0 0.0
        %967 = vmatprep.subr.mxu0 0.0
        %968 = vmatpush2.msra.mxu0 0.0
        %969 = vmatprep.subr.mxu0 0.0
        %970 = vmatpush2.msra.mxu0 0.0
        %971 = vmatprep.subr.mxu0 0.0
        %972 = vmatpush2.msra.mxu0 0.0
        %973 = vmatprep.subr.mxu0 0.0
        %974 = vmatpush2.msra.mxu0 0.0
        %975 = vmatprep.subr.mxu0 0.0
        %976 = vmatpush2.msra.mxu0 0.0
        %977 = vmatprep.subr.mxu0 0.0
        %978 = vmatpush2.msra.mxu0 0.0
        %979 = vmatprep.subr.mxu0 0.0
        %980 = vmatpush2.msra.mxu0 0.0
        %981 = vmatprep.subr.mxu0 0.0
        %982 = vmatpush2.msra.mxu0 0.0
        %983 = vmatprep.mubr.f32.mxu0 0.0
        %984 = vmatmul.mubr.f32.gmra.mxu0 %v834
        %v985 = vpop.f32.mrf.mxu0
        %v986 = vadd.f32 0.0, %v985
        %v987 = vpop.f32.mrf.mxu0
        %v988 = vadd.f32 0.0, %v987
        %989 = vdwg.mxu0
        %v990 = vlog2.pop %v986
        %v991 = vmul.f32 %v990, 0.6931472
        %v992 = vlog2.pop %v988
        %v993 = vmul.f32 %v992, 0.6931472
        %v994 = vadd.f32 %v687, %v991
        %v995 = vadd.f32 %v693, %v993
        %v996 = vadd.f32 %v911, %v994
        %v997 = vadd.f32 %v912, %v995
        %v998 = vadd.f32 %v579, %v583
        %v999 = vadd.f32 %v581, %v585
        %v1000 = vmul.f32 %v998, %v798
        %v1001 = vmul.f32 %v999, %v799
        %1002 = vmatprep.subr.mxu0 0.0
        %1003 = vmatpush1.msra.mxu0 0.0
        %1004 = vmatprep.subr.mxu0 0.0
        %1005 = vmatpush1.msra.mxu0 0.0
        %1006 = vmatprep.subr.mxu0 0.0
        %1007 = vmatpush1.msra.mxu0 0.0
        %1008 = vmatprep.subr.mxu0 0.0
        %1009 = vmatpush1.msra.mxu0 0.0
        %1010 = vmatprep.subr.mxu0 0.0
        %1011 = vmatpush1.msra.mxu0 0.0
        %1012 = vmatprep.subr.mxu0 0.0
        %1013 = vmatpush1.msra.mxu0 0.0
        %1014 = vmatprep.subr.mxu0 0.0
        %1015 = vmatpush1.msra.mxu0 0.0
        %1016 = vmatprep.subr.mxu0 0.0
        %1017 = vmatpush1.msra.mxu0 0.0
        %1018 = vmatprep.subr.mxu0 0.0
        %1019 = vmatpush1.msra.mxu0 0.0
        %1020 = vmatprep.subr.mxu0 0.0
        %1021 = vmatpush1.msra.mxu0 0.0
        %1022 = vmatprep.subr.mxu0 0.0
        %1023 = vmatpush1.msra.mxu0 0.0
        %1024 = vmatprep.subr.mxu0 0.0
        %1025 = vmatpush1.msra.mxu0 0.0
        %1026 = vmatprep.subr.mxu0 0.0
        %1027 = vmatpush1.msra.mxu0 0.0
        %1028 = vmatprep.subr.mxu0 0.0
        %1029 = vmatpush1.msra.mxu0 0.0
        %1030 = vmatprep.subr.mxu0 0.0
        %1031 = vmatpush1.msra.mxu0 0.0
        %1032 = vmatprep.subr.mxu0 %v1001
        %1033 = vmatpush1.msra.mxu0 %v1000
        %1034 = vmatprep.subr.mxu0 0.0
        %1035 = vmatpush2.msra.mxu0 0.0
        %1036 = vmatprep.subr.mxu0 0.0
        %1037 = vmatpush2.msra.mxu0 0.0
        %1038 = vmatprep.subr.mxu0 0.0
        %1039 = vmatpush2.msra.mxu0 0.0
        %1040 = vmatprep.subr.mxu0 0.0
        %1041 = vmatpush2.msra.mxu0 0.0
        %1042 = vmatprep.subr.mxu0 0.0
        %1043 = vmatpush2.msra.mxu0 0.0
        %1044 = vmatprep.subr.mxu0 0.0
        %1045 = vmatpush2.msra.mxu0 0.0
        %1046 = vmatprep.subr.mxu0 0.0
        %1047 = vmatpush2.msra.mxu0 0.0
        %1048 = vmatprep.subr.mxu0 0.0
        %1049 = vmatpush2.msra.mxu0 0.0
        %1050 = vmatprep.subr.mxu0 0.0
        %1051 = vmatpush2.msra.mxu0 0.0
        %1052 = vmatprep.subr.mxu0 0.0
        %1053 = vmatpush2.msra.mxu0 0.0
        %1054 = vmatprep.subr.mxu0 0.0
        %1055 = vmatpush2.msra.mxu0 0.0
        %1056 = vmatprep.subr.mxu0 0.0
        %1057 = vmatpush2.msra.mxu0 0.0
        %1058 = vmatprep.subr.mxu0 0.0
        %1059 = vmatpush2.msra.mxu0 0.0
        %1060 = vmatprep.subr.mxu0 0.0
        %1061 = vmatpush2.msra.mxu0 0.0
        %1062 = vmatprep.subr.mxu0 0.0
        %1063 = vmatpush2.msra.mxu0 0.0
        %1064 = vmatprep.subr.mxu0 0.0
        %1065 = vmatpush2.msra.mxu0 0.0
        %1066 = vmatprep.mubr.f32.mxu0 0.0
        %1067 = vmatmul.mubr.f32.gmra.mxu0 %v834
        %v1068 = vpop.f32.mrf.mxu0
        %v1069 = vadd.f32 0.0, %v1068
        %v1070 = vpop.f32.mrf.mxu0
        %v1071 = vadd.f32 0.0, %v1070
        %1072 = vdwg.mxu0
        %v1073 = vsub.f32 %v996, %v1069
        %v1074 = vsub.f32 %v997, %v1071
        %vm1075 = vcmp.ne.s32.totalorder %v497, 255
        %v1078 = vcombine.low %v1073, %v1074
        %v1080 = vunpack.c.l.s4 1966171168
        %v1081 = vunpack.c.0.s8 %v1080
        %v1082 = vlaneseq
        %v1083 = vshrl.u32 %v1082, 7
        %v1084 = vsub.s32 %v1081, %v1083
        %v1085 = vrot.slane %v1078, %v1084
        %v1087 = vunpack.c.l.s4 1966171168
        %v1088 = vunpack.c.0.s8 %v1087
        %v1089 = vlaneseq
        %v1090 = vshrl.u32 %v1089, 7
        %v1091 = vsub.s32 %v1088, %v1090
        %v1092 = vrot.slane %v1085, %v1091
        %v1094 = vsel %vm1075, %v1092, 0.0
        %v1095 = vsub.f32 %v637, %v699
        %v1096 = vsub.f32 %v639, %v705
        %v1097 = vmul.f32 %v1095, 1.442695
        %v1098 = vpow.pop %v1097
        %v1099 = vmul.f32 %v1096, 1.442695
        %v1100 = vpow.pop %v1099
        %1101 = vmatprep.subr.mxu0 0.0
        %1102 = vmatpush1.msra.mxu0 0.0
        %1103 = vmatprep.subr.mxu0 0.0
        %1104 = vmatpush1.msra.mxu0 0.0
        %1105 = vmatprep.subr.mxu0 0.0
        %1106 = vmatpush1.msra.mxu0 0.0
        %1107 = vmatprep.subr.mxu0 0.0
        %1108 = vmatpush1.msra.mxu0 0.0
        %1109 = vmatprep.subr.mxu0 0.0
        %1110 = vmatpush1.msra.mxu0 0.0
        %1111 = vmatprep.subr.mxu0 0.0
        %1112 = vmatpush1.msra.mxu0 0.0
        %1113 = vmatprep.subr.mxu0 0.0
        %1114 = vmatpush1.msra.mxu0 0.0
        %1115 = vmatprep.subr.mxu0 0.0
        %1116 = vmatpush1.msra.mxu0 0.0
        %1117 = vmatprep.subr.mxu0 0.0
        %1118 = vmatpush1.msra.mxu0 0.0
        %1119 = vmatprep.subr.mxu0 0.0
        %1120 = vmatpush1.msra.mxu0 0.0
        %1121 = vmatprep.subr.mxu0 0.0
        %1122 = vmatpush1.msra.mxu0 0.0
        %1123 = vmatprep.subr.mxu0 0.0
        %1124 = vmatpush1.msra.mxu0 0.0
        %1125 = vmatprep.subr.mxu0 0.0
        %1126 = vmatpush1.msra.mxu0 0.0
        %1127 = vmatprep.subr.mxu0 0.0
        %1128 = vmatpush1.msra.mxu0 0.0
        %1129 = vmatprep.subr.mxu0 0.0
        %1130 = vmatpush1.msra.mxu0 0.0
        %1131 = vmatprep.subr.mxu0 %v1100
        %1132 = vmatpush1.msra.mxu0 %v1098
        %1133 = vmatprep.subr.mxu0 0.0
        %1134 = vmatpush2.msra.mxu0 0.0
        %1135 = vmatprep.subr.mxu0 0.0
        %1136 = vmatpush2.msra.mxu0 0.0
        %1137 = vmatprep.subr.mxu0 0.0
        %1138 = vmatpush2.msra.mxu0 0.0
        %1139 = vmatprep.subr.mxu0 0.0
        %1140 = vmatpush2.msra.mxu0 0.0
        %1141 = vmatprep.subr.mxu0 0.0
        %1142 = vmatpush2.msra.mxu0 0.0
        %1143 = vmatprep.subr.mxu0 0.0
        %1144 = vmatpush2.msra.mxu0 0.0
        %1145 = vmatprep.subr.mxu0 0.0
        %1146 = vmatpush2.msra.mxu0 0.0
        %1147 = vmatprep.subr.mxu0 0.0
        %1148 = vmatpush2.msra.mxu0 0.0
        %1149 = vmatprep.subr.mxu0 0.0
        %1150 = vmatpush2.msra.mxu0 0.0
        %1151 = vmatprep.subr.mxu0 0.0
        %1152 = vmatpush2.msra.mxu0 0.0
        %1153 = vmatprep.subr.mxu0 0.0
        %1154 = vmatpush2.msra.mxu0 0.0
        %1155 = vmatprep.subr.mxu0 0.0
        %1156 = vmatpush2.msra.mxu0 0.0
        %1157 = vmatprep.subr.mxu0 0.0
        %1158 = vmatpush2.msra.mxu0 0.0
        %1159 = vmatprep.subr.mxu0 0.0
        %1160 = vmatpush2.msra.mxu0 0.0
        %1161 = vmatprep.subr.mxu0 0.0
        %1162 = vmatpush2.msra.mxu0 0.0
        %1163 = vmatprep.subr.mxu0 0.0
        %1164 = vmatpush2.msra.mxu0 0.0
        %1165 = vmatprep.mubr.f32.mxu0 0.0
        %1166 = vmatmul.mubr.f32.gmra.mxu0 %v834
        %v1167 = vpop.f32.mrf.mxu0
        %v1168 = vadd.f32 0.0, %v1167
        %v1169 = vpop.f32.mrf.mxu0
        %v1170 = vadd.f32 0.0, %v1169
        %1171 = vdwg.mxu0
        %v1172 = vlog2.pop %v1168
        %v1173 = vmul.f32 %v1172, 0.6931472
        %v1174 = vlog2.pop %v1170
        %v1175 = vmul.f32 %v1174, 0.6931472
        %v1176 = vadd.f32 %v699, %v1173
        %v1177 = vadd.f32 %v705, %v1175
        %v1178 = vsub.f32 %v641, %v711
        %v1179 = vsub.f32 %v643, %v717
        %v1180 = vmul.f32 %v1178, 1.442695
        %v1181 = vpow.pop %v1180
        %v1182 = vmul.f32 %v1179, 1.442695
        %v1183 = vpow.pop %v1182
        %1184 = vmatprep.subr.mxu0 0.0
        %1185 = vmatpush1.msra.mxu0 0.0
        %1186 = vmatprep.subr.mxu0 0.0
        %1187 = vmatpush1.msra.mxu0 0.0
        %1188 = vmatprep.subr.mxu0 0.0
        %1189 = vmatpush1.msra.mxu0 0.0
        %1190 = vmatprep.subr.mxu0 0.0
        %1191 = vmatpush1.msra.mxu0 0.0
        %1192 = vmatprep.subr.mxu0 0.0
        %1193 = vmatpush1.msra.mxu0 0.0
        %1194 = vmatprep.subr.mxu0 0.0
        %1195 = vmatpush1.msra.mxu0 0.0
        %1196 = vmatprep.subr.mxu0 0.0
        %1197 = vmatpush1.msra.mxu0 0.0
        %1198 = vmatprep.subr.mxu0 0.0
        %1199 = vmatpush1.msra.mxu0 0.0
        %1200 = vmatprep.subr.mxu0 0.0
        %1201 = vmatpush1.msra.mxu0 0.0
        %1202 = vmatprep.subr.mxu0 0.0
        %1203 = vmatpush1.msra.mxu0 0.0
        %1204 = vmatprep.subr.mxu0 0.0
        %1205 = vmatpush1.msra.mxu0 0.0
        %1206 = vmatprep.subr.mxu0 0.0
        %1207 = vmatpush1.msra.mxu0 0.0
        %1208 = vmatprep.subr.mxu0 0.0
        %1209 = vmatpush1.msra.mxu0 0.0
        %1210 = vmatprep.subr.mxu0 0.0
        %1211 = vmatpush1.msra.mxu0 0.0
        %1212 = vmatprep.subr.mxu0 0.0
        %1213 = vmatpush1.msra.mxu0 0.0
        %1214 = vmatprep.subr.mxu0 %v1183
        %1215 = vmatpush1.msra.mxu0 %v1181
        %1216 = vmatprep.subr.mxu0 0.0
        %1217 = vmatpush2.msra.mxu0 0.0
        %1218 = vmatprep.subr.mxu0 0.0
        %1219 = vmatpush2.msra.mxu0 0.0
        %1220 = vmatprep.subr.mxu0 0.0
        %1221 = vmatpush2.msra.mxu0 0.0
        %1222 = vmatprep.subr.mxu0 0.0
        %1223 = vmatpush2.msra.mxu0 0.0
        %1224 = vmatprep.subr.mxu0 0.0
        %1225 = vmatpush2.msra.mxu0 0.0
        %1226 = vmatprep.subr.mxu0 0.0
        %1227 = vmatpush2.msra.mxu0 0.0
        %1228 = vmatprep.subr.mxu0 0.0
        %1229 = vmatpush2.msra.mxu0 0.0
        %1230 = vmatprep.subr.mxu0 0.0
        %1231 = vmatpush2.msra.mxu0 0.0
        %1232 = vmatprep.subr.mxu0 0.0
        %1233 = vmatpush2.msra.mxu0 0.0
        %1234 = vmatprep.subr.mxu0 0.0
        %1235 = vmatpush2.msra.mxu0 0.0
        %1236 = vmatprep.subr.mxu0 0.0
        %1237 = vmatpush2.msra.mxu0 0.0
        %1238 = vmatprep.subr.mxu0 0.0
        %1239 = vmatpush2.msra.mxu0 0.0
        %1240 = vmatprep.subr.mxu0 0.0
        %1241 = vmatpush2.msra.mxu0 0.0
        %1242 = vmatprep.subr.mxu0 0.0
        %1243 = vmatpush2.msra.mxu0 0.0
        %1244 = vmatprep.subr.mxu0 0.0
        %1245 = vmatpush2.msra.mxu0 0.0
        %1246 = vmatprep.subr.mxu0 0.0
        %1247 = vmatpush2.msra.mxu0 0.0
        %1248 = vmatprep.mubr.f32.mxu0 0.0
        %1249 = vmatmul.mubr.f32.gmra.mxu0 %v834
        %v1250 = vpop.f32.mrf.mxu0
        %v1251 = vadd.f32 0.0, %v1250
        %v1252 = vpop.f32.mrf.mxu0
        %v1253 = vadd.f32 0.0, %v1252
        %1254 = vdwg.mxu0
        %v1255 = vlog2.pop %v1251
        %v1256 = vmul.f32 %v1255, 0.6931472
        %v1257 = vlog2.pop %v1253
        %v1258 = vmul.f32 %v1257, 0.6931472
        %v1259 = vadd.f32 %v711, %v1256
        %v1260 = vadd.f32 %v717, %v1258
        %v1261 = vadd.f32 %v1176, %v1259
        %v1262 = vadd.f32 %v1177, %v1260
        %v1263 = vadd.f32 %v637, %v641
        %v1264 = vadd.f32 %v639, %v643
        %v1265 = vmul.f32 %v1263, %v812
        %v1266 = vmul.f32 %v1264, %v813
        %1267 = vmatprep.subr.mxu0 0.0
        %1268 = vmatpush1.msra.mxu0 0.0
        %1269 = vmatprep.subr.mxu0 0.0
        %1270 = vmatpush1.msra.mxu0 0.0
        %1271 = vmatprep.subr.mxu0 0.0
        %1272 = vmatpush1.msra.mxu0 0.0
        %1273 = vmatprep.subr.mxu0 0.0
        %1274 = vmatpush1.msra.mxu0 0.0
        %1275 = vmatprep.subr.mxu0 0.0
        %1276 = vmatpush1.msra.mxu0 0.0
        %1277 = vmatprep.subr.mxu0 0.0
        %1278 = vmatpush1.msra.mxu0 0.0
        %1279 = vmatprep.subr.mxu0 0.0
        %1280 = vmatpush1.msra.mxu0 0.0
        %1281 = vmatprep.subr.mxu0 0.0
        %1282 = vmatpush1.msra.mxu0 0.0
        %1283 = vmatprep.subr.mxu0 0.0
        %1284 = vmatpush1.msra.mxu0 0.0
        %1285 = vmatprep.subr.mxu0 0.0
        %1286 = vmatpush1.msra.mxu0 0.0
        %1287 = vmatprep.subr.mxu0 0.0
        %1288 = vmatpush1.msra.mxu0 0.0
        %1289 = vmatprep.subr.mxu0 0.0
        %1290 = vmatpush1.msra.mxu0 0.0
        %1291 = vmatprep.subr.mxu0 0.0
        %1292 = vmatpush1.msra.mxu0 0.0
        %1293 = vmatprep.subr.mxu0 0.0
        %1294 = vmatpush1.msra.mxu0 0.0
        %1295 = vmatprep.subr.mxu0 0.0
        %1296 = vmatpush1.msra.mxu0 0.0
        %1297 = vmatprep.subr.mxu0 %v1266
        %1298 = vmatpush1.msra.mxu0 %v1265
        %1299 = vmatprep.subr.mxu0 0.0
        %1300 = vmatpush2.msra.mxu0 0.0
        %1301 = vmatprep.subr.mxu0 0.0
        %1302 = vmatpush2.msra.mxu0 0.0
        %1303 = vmatprep.subr.mxu0 0.0
        %1304 = vmatpush2.msra.mxu0 0.0
        %1305 = vmatprep.subr.mxu0 0.0
        %1306 = vmatpush2.msra.mxu0 0.0
        %1307 = vmatprep.subr.mxu0 0.0
        %1308 = vmatpush2.msra.mxu0 0.0
        %1309 = vmatprep.subr.mxu0 0.0
        %1310 = vmatpush2.msra.mxu0 0.0
        %1311 = vmatprep.subr.mxu0 0.0
        %1312 = vmatpush2.msra.mxu0 0.0
        %1313 = vmatprep.subr.mxu0 0.0
        %1314 = vmatpush2.msra.mxu0 0.0
        %1315 = vmatprep.subr.mxu0 0.0
        %1316 = vmatpush2.msra.mxu0 0.0
        %1317 = vmatprep.subr.mxu0 0.0
        %1318 = vmatpush2.msra.mxu0 0.0
        %1319 = vmatprep.subr.mxu0 0.0
        %1320 = vmatpush2.msra.mxu0 0.0
        %1321 = vmatprep.subr.mxu0 0.0
        %1322 = vmatpush2.msra.mxu0 0.0
        %1323 = vmatprep.subr.mxu0 0.0
        %1324 = vmatpush2.msra.mxu0 0.0
        %1325 = vmatprep.subr.mxu0 0.0
        %1326 = vmatpush2.msra.mxu0 0.0
        %1327 = vmatprep.subr.mxu0 0.0
        %1328 = vmatpush2.msra.mxu0 0.0
        %1329 = vmatprep.subr.mxu0 0.0
        %1330 = vmatpush2.msra.mxu0 0.0
        %1331 = vmatprep.mubr.f32.mxu0 0.0
        %1332 = vmatmul.mubr.f32.gmra.mxu0 %v834
        %v1333 = vpop.f32.mrf.mxu0
        %v1334 = vadd.f32 0.0, %v1333
        %v1335 = vpop.f32.mrf.mxu0
        %v1336 = vadd.f32 0.0, %v1335
        %1337 = vdwg.mxu0
        %v1338 = vsub.f32 %v1261, %v1334
        %v1339 = vsub.f32 %v1262, %v1336
        %vm1340 = vcmp.ne.s32.totalorder %v499, 255
        %v1343 = vcombine.low %v1338, %v1339
        %v1345 = vunpack.c.l.s4 1966171168
        %v1346 = vunpack.c.0.s8 %v1345
        %v1347 = vlaneseq
        %v1348 = vshrl.u32 %v1347, 7
        %v1349 = vsub.s32 %v1346, %v1348
        %v1350 = vrot.slane %v1343, %v1349
        %v1352 = vunpack.c.l.s4 1966171168
        %v1353 = vunpack.c.0.s8 %v1352
        %v1354 = vlaneseq
        %v1355 = vshrl.u32 %v1354, 7
        %v1356 = vsub.s32 %v1353, %v1355
        %v1357 = vrot.slane %v1350, %v1356
        %v1359 = vsel %vm1340, %v1357, 0.0
        %v1360 = vsub.f32 %v664, %v723
        %v1361 = vsub.f32 %v665, %v729
        %v1362 = vmul.f32 %v1360, 1.442695
        %v1363 = vpow.pop %v1362
        %v1364 = vmul.f32 %v1361, 1.442695
        %v1365 = vpow.pop %v1364
        %1366 = vmatprep.subr.mxu0 0.0
        %1367 = vmatpush1.msra.mxu0 0.0
        %1368 = vmatprep.subr.mxu0 0.0
        %1369 = vmatpush1.msra.mxu0 0.0
        %1370 = vmatprep.subr.mxu0 0.0
        %1371 = vmatpush1.msra.mxu0 0.0
        %1372 = vmatprep.subr.mxu0 0.0
        %1373 = vmatpush1.msra.mxu0 0.0
        %1374 = vmatprep.subr.mxu0 0.0
        %1375 = vmatpush1.msra.mxu0 0.0
        %1376 = vmatprep.subr.mxu0 0.0
        %1377 = vmatpush1.msra.mxu0 0.0
        %1378 = vmatprep.subr.mxu0 0.0
        %1379 = vmatpush1.msra.mxu0 0.0
        %1380 = vmatprep.subr.mxu0 0.0
        %1381 = vmatpush1.msra.mxu0 0.0
        %1382 = vmatprep.subr.mxu0 0.0
        %1383 = vmatpush1.msra.mxu0 0.0
        %1384 = vmatprep.subr.mxu0 0.0
        %1385 = vmatpush1.msra.mxu0 0.0
        %1386 = vmatprep.subr.mxu0 0.0
        %1387 = vmatpush1.msra.mxu0 0.0
        %1388 = vmatprep.subr.mxu0 0.0
        %1389 = vmatpush1.msra.mxu0 0.0
        %1390 = vmatprep.subr.mxu0 0.0
        %1391 = vmatpush1.msra.mxu0 0.0
        %1392 = vmatprep.subr.mxu0 0.0
        %1393 = vmatpush1.msra.mxu0 0.0
        %1394 = vmatprep.subr.mxu0 0.0
        %1395 = vmatpush1.msra.mxu0 0.0
        %1396 = vmatprep.subr.mxu0 %v1365
        %1397 = vmatpush1.msra.mxu0 %v1363
        %1398 = vmatprep.subr.mxu0 0.0
        %1399 = vmatpush2.msra.mxu0 0.0
        %1400 = vmatprep.subr.mxu0 0.0
        %1401 = vmatpush2.msra.mxu0 0.0
        %1402 = vmatprep.subr.mxu0 0.0
        %1403 = vmatpush2.msra.mxu0 0.0
        %1404 = vmatprep.subr.mxu0 0.0
        %1405 = vmatpush2.msra.mxu0 0.0
        %1406 = vmatprep.subr.mxu0 0.0
        %1407 = vmatpush2.msra.mxu0 0.0
        %1408 = vmatprep.subr.mxu0 0.0
        %1409 = vmatpush2.msra.mxu0 0.0
        %1410 = vmatprep.subr.mxu0 0.0
        %1411 = vmatpush2.msra.mxu0 0.0
        %1412 = vmatprep.subr.mxu0 0.0
        %1413 = vmatpush2.msra.mxu0 0.0
        %1414 = vmatprep.subr.mxu0 0.0
        %1415 = vmatpush2.msra.mxu0 0.0
        %1416 = vmatprep.subr.mxu0 0.0
        %1417 = vmatpush2.msra.mxu0 0.0
        %1418 = vmatprep.subr.mxu0 0.0
        %1419 = vmatpush2.msra.mxu0 0.0
        %1420 = vmatprep.subr.mxu0 0.0
        %1421 = vmatpush2.msra.mxu0 0.0
        %1422 = vmatprep.subr.mxu0 0.0
        %1423 = vmatpush2.msra.mxu0 0.0
        %1424 = vmatprep.subr.mxu0 0.0
        %1425 = vmatpush2.msra.mxu0 0.0
        %1426 = vmatprep.subr.mxu0 0.0
        %1427 = vmatpush2.msra.mxu0 0.0
        %1428 = vmatprep.subr.mxu0 0.0
        %1429 = vmatpush2.msra.mxu0 0.0
        %1430 = vmatprep.mubr.f32.mxu0 0.0
        %1431 = vmatmul.mubr.f32.gmra.mxu0 %v834
        %v1432 = vpop.f32.mrf.mxu0
        %v1433 = vadd.f32 0.0, %v1432
        %v1434 = vpop.f32.mrf.mxu0
        %v1435 = vadd.f32 0.0, %v1434
        %1436 = vdwg.mxu0
        %v1437 = vlog2.pop %v1433
        %v1438 = vmul.f32 %v1437, 0.6931472
        %v1439 = vlog2.pop %v1435
        %v1440 = vmul.f32 %v1439, 0.6931472
        %v1441 = vadd.f32 %v723, %v1438
        %v1442 = vadd.f32 %v729, %v1440
        %v1443 = vmul.f32 %v664, %v824
        %v1444 = vmul.f32 %v665, %v825
        %1445 = vmatprep.subr.mxu0 0.0
        %1446 = vmatpush1.msra.mxu0 0.0
        %1447 = vmatprep.subr.mxu0 0.0
        %1448 = vmatpush1.msra.mxu0 0.0
        %1449 = vmatprep.subr.mxu0 0.0
        %1450 = vmatpush1.msra.mxu0 0.0
        %1451 = vmatprep.subr.mxu0 0.0
        %1452 = vmatpush1.msra.mxu0 0.0
        %1453 = vmatprep.subr.mxu0 0.0
        %1454 = vmatpush1.msra.mxu0 0.0
        %1455 = vmatprep.subr.mxu0 0.0
        %1456 = vmatpush1.msra.mxu0 0.0
        %1457 = vmatprep.subr.mxu0 0.0
        %1458 = vmatpush1.msra.mxu0 0.0
        %1459 = vmatprep.subr.mxu0 0.0
        %1460 = vmatpush1.msra.mxu0 0.0
        %1461 = vmatprep.subr.mxu0 0.0
        %1462 = vmatpush1.msra.mxu0 0.0
        %1463 = vmatprep.subr.mxu0 0.0
        %1464 = vmatpush1.msra.mxu0 0.0
        %1465 = vmatprep.subr.mxu0 0.0
        %1466 = vmatpush1.msra.mxu0 0.0
        %1467 = vmatprep.subr.mxu0 0.0
        %1468 = vmatpush1.msra.mxu0 0.0
        %1469 = vmatprep.subr.mxu0 0.0
        %1470 = vmatpush1.msra.mxu0 0.0
        %1471 = vmatprep.subr.mxu0 0.0
        %1472 = vmatpush1.msra.mxu0 0.0
        %1473 = vmatprep.subr.mxu0 0.0
        %1474 = vmatpush1.msra.mxu0 0.0
        %1475 = vmatprep.subr.mxu0 %v1444
        %1476 = vmatpush1.msra.mxu0 %v1443
        %1477 = vmatprep.subr.mxu0 0.0
        %1478 = vmatpush2.msra.mxu0 0.0
        %1479 = vmatprep.subr.mxu0 0.0
        %1480 = vmatpush2.msra.mxu0 0.0
        %1481 = vmatprep.subr.mxu0 0.0
        %1482 = vmatpush2.msra.mxu0 0.0
        %1483 = vmatprep.subr.mxu0 0.0
        %1484 = vmatpush2.msra.mxu0 0.0
        %1485 = vmatprep.subr.mxu0 0.0
        %1486 = vmatpush2.msra.mxu0 0.0
        %1487 = vmatprep.subr.mxu0 0.0
        %1488 = vmatpush2.msra.mxu0 0.0
        %1489 = vmatprep.subr.mxu0 0.0
        %1490 = vmatpush2.msra.mxu0 0.0
        %1491 = vmatprep.subr.mxu0 0.0
        %1492 = vmatpush2.msra.mxu0 0.0
        %1493 = vmatprep.subr.mxu0 0.0
        %1494 = vmatpush2.msra.mxu0 0.0
        %1495 = vmatprep.subr.mxu0 0.0
        %1496 = vmatpush2.msra.mxu0 0.0
        %1497 = vmatprep.subr.mxu0 0.0
        %1498 = vmatpush2.msra.mxu0 0.0
        %1499 = vmatprep.subr.mxu0 0.0
        %1500 = vmatpush2.msra.mxu0 0.0
        %1501 = vmatprep.subr.mxu0 0.0
        %1502 = vmatpush2.msra.mxu0 0.0
        %1503 = vmatprep.subr.mxu0 0.0
        %1504 = vmatpush2.msra.mxu0 0.0
        %1505 = vmatprep.subr.mxu0 0.0
        %1506 = vmatpush2.msra.mxu0 0.0
        %1507 = vmatprep.subr.mxu0 0.0
        %1508 = vmatpush2.msra.mxu0 0.0
        %1509 = vmatprep.mubr.f32.mxu0 0.0
        %1510 = vmatmul.mubr.f32.gmra.mxu0 %v834
        %v1511 = vpop.f32.mrf.mxu0
        %v1512 = vadd.f32 0.0, %v1511
        %v1513 = vpop.f32.mrf.mxu0
        %v1514 = vadd.f32 0.0, %v1513
        %1515 = vdwg.mxu0
        %v1516 = vsub.f32 %v1441, %v1512
        %v1517 = vsub.f32 %v1442, %v1514
        %v1518 = vsub.f32 %v666, %v735
        %v1519 = vsub.f32 %v667, %v741
        %v1520 = vmul.f32 %v1518, 1.442695
        %v1521 = vpow.pop %v1520
        %v1522 = vmul.f32 %v1519, 1.442695
        %v1523 = vpow.pop %v1522
        %1524 = vmatprep.subr.mxu0 0.0
        %1525 = vmatpush1.msra.mxu0 0.0
        %1526 = vmatprep.subr.mxu0 0.0
        %1527 = vmatpush1.msra.mxu0 0.0
        %1528 = vmatprep.subr.mxu0 0.0
        %1529 = vmatpush1.msra.mxu0 0.0
        %1530 = vmatprep.subr.mxu0 0.0
        %1531 = vmatpush1.msra.mxu0 0.0
        %1532 = vmatprep.subr.mxu0 0.0
        %1533 = vmatpush1.msra.mxu0 0.0
        %1534 = vmatprep.subr.mxu0 0.0
        %1535 = vmatpush1.msra.mxu0 0.0
        %1536 = vmatprep.subr.mxu0 0.0
        %1537 = vmatpush1.msra.mxu0 0.0
        %1538 = vmatprep.subr.mxu0 0.0
        %1539 = vmatpush1.msra.mxu0 0.0
        %1540 = vmatprep.subr.mxu0 0.0
        %1541 = vmatpush1.msra.mxu0 0.0
        %1542 = vmatprep.subr.mxu0 0.0
        %1543 = vmatpush1.msra.mxu0 0.0
        %1544 = vmatprep.subr.mxu0 0.0
        %1545 = vmatpush1.msra.mxu0 0.0
        %1546 = vmatprep.subr.mxu0 0.0
        %1547 = vmatpush1.msra.mxu0 0.0
        %1548 = vmatprep.subr.mxu0 0.0
        %1549 = vmatpush1.msra.mxu0 0.0
        %1550 = vmatprep.subr.mxu0 0.0
        %1551 = vmatpush1.msra.mxu0 0.0
        %1552 = vmatprep.subr.mxu0 0.0
        %1553 = vmatpush1.msra.mxu0 0.0
        %1554 = vmatprep.subr.mxu0 %v1523
        %1555 = vmatpush1.msra.mxu0 %v1521
        %1556 = vmatprep.subr.mxu0 0.0
        %1557 = vmatpush2.msra.mxu0 0.0
        %1558 = vmatprep.subr.mxu0 0.0
        %1559 = vmatpush2.msra.mxu0 0.0
        %1560 = vmatprep.subr.mxu0 0.0
        %1561 = vmatpush2.msra.mxu0 0.0
        %1562 = vmatprep.subr.mxu0 0.0
        %1563 = vmatpush2.msra.mxu0 0.0
        %1564 = vmatprep.subr.mxu0 0.0
        %1565 = vmatpush2.msra.mxu0 0.0
        %1566 = vmatprep.subr.mxu0 0.0
        %1567 = vmatpush2.msra.mxu0 0.0
        %1568 = vmatprep.subr.mxu0 0.0
        %1569 = vmatpush2.msra.mxu0 0.0
        %1570 = vmatprep.subr.mxu0 0.0
        %1571 = vmatpush2.msra.mxu0 0.0
        %1572 = vmatprep.subr.mxu0 0.0
        %1573 = vmatpush2.msra.mxu0 0.0
        %1574 = vmatprep.subr.mxu0 0.0
        %1575 = vmatpush2.msra.mxu0 0.0
        %1576 = vmatprep.subr.mxu0 0.0
        %1577 = vmatpush2.msra.mxu0 0.0
        %1578 = vmatprep.subr.mxu0 0.0
        %1579 = vmatpush2.msra.mxu0 0.0
        %1580 = vmatprep.subr.mxu0 0.0
        %1581 = vmatpush2.msra.mxu0 0.0
        %1582 = vmatprep.subr.mxu0 0.0
        %1583 = vmatpush2.msra.mxu0 0.0
        %1584 = vmatprep.subr.mxu0 0.0
        %1585 = vmatpush2.msra.mxu0 0.0
        %1586 = vmatprep.subr.mxu0 0.0
        %1587 = vmatpush2.msra.mxu0 0.0
        %1588 = vmatprep.mubr.f32.mxu0 0.0
        %1589 = vmatmul.mubr.f32.gmra.mxu0 %v834
        %v1590 = vpop.f32.mrf.mxu0
        %v1591 = vadd.f32 0.0, %v1590
        %v1592 = vpop.f32.mrf.mxu0
        %v1593 = vadd.f32 0.0, %v1592
        %1594 = vdwg.mxu0
        %v1595 = vlog2.pop %v1591
        %v1596 = vmul.f32 %v1595, 0.6931472
        %v1597 = vlog2.pop %v1593
        %v1598 = vmul.f32 %v1597, 0.6931472
        %v1599 = vadd.f32 %v735, %v1596
        %v1600 = vadd.f32 %v741, %v1598
        %v1601 = vadd.f32 %v1516, %v1599
        %v1602 = vadd.f32 %v1517, %v1600
        %v1603 = vmul.f32 %v666, %v818
        %v1604 = vmul.f32 %v667, %v819
        %1605 = vmatprep.subr.mxu0 0.0
        %1606 = vmatpush1.msra.mxu0 0.0
        %1607 = vmatprep.subr.mxu0 0.0
        %1608 = vmatpush1.msra.mxu0 0.0
        %1609 = vmatprep.subr.mxu0 0.0
        %1610 = vmatpush1.msra.mxu0 0.0
        %1611 = vmatprep.subr.mxu0 0.0
        %1612 = vmatpush1.msra.mxu0 0.0
        %1613 = vmatprep.subr.mxu0 0.0
        %1614 = vmatpush1.msra.mxu0 0.0
        %1615 = vmatprep.subr.mxu0 0.0
        %1616 = vmatpush1.msra.mxu0 0.0
        %1617 = vmatprep.subr.mxu0 0.0
        %1618 = vmatpush1.msra.mxu0 0.0
        %1619 = vmatprep.subr.mxu0 0.0
        %1620 = vmatpush1.msra.mxu0 0.0
        %1621 = vmatprep.subr.mxu0 0.0
        %1622 = vmatpush1.msra.mxu0 0.0
        %1623 = vmatprep.subr.mxu0 0.0
        %1624 = vmatpush1.msra.mxu0 0.0
        %1625 = vmatprep.subr.mxu0 0.0
        %1626 = vmatpush1.msra.mxu0 0.0
        %1627 = vmatprep.subr.mxu0 0.0
        %1628 = vmatpush1.msra.mxu0 0.0
        %1629 = vmatprep.subr.mxu0 0.0
        %1630 = vmatpush1.msra.mxu0 0.0
        %1631 = vmatprep.subr.mxu0 0.0
        %1632 = vmatpush1.msra.mxu0 0.0
        %1633 = vmatprep.subr.mxu0 0.0
        %1634 = vmatpush1.msra.mxu0 0.0
        %1635 = vmatprep.subr.mxu0 %v1604
        %1636 = vmatpush1.msra.mxu0 %v1603
        %1637 = vmatprep.subr.mxu0 0.0
        %1638 = vmatpush2.msra.mxu0 0.0
        %1639 = vmatprep.subr.mxu0 0.0
        %1640 = vmatpush2.msra.mxu0 0.0
        %1641 = vmatprep.subr.mxu0 0.0
        %1642 = vmatpush2.msra.mxu0 0.0
        %1643 = vmatprep.subr.mxu0 0.0
        %1644 = vmatpush2.msra.mxu0 0.0
        %1645 = vmatprep.subr.mxu0 0.0
        %1646 = vmatpush2.msra.mxu0 0.0
        %1647 = vmatprep.subr.mxu0 0.0
        %1648 = vmatpush2.msra.mxu0 0.0
        %1649 = vmatprep.subr.mxu0 0.0
        %1650 = vmatpush2.msra.mxu0 0.0
        %1651 = vmatprep.subr.mxu0 0.0
        %1652 = vmatpush2.msra.mxu0 0.0
        %1653 = vmatprep.subr.mxu0 0.0
        %1654 = vmatpush2.msra.mxu0 0.0
        %1655 = vmatprep.subr.mxu0 0.0
        %1656 = vmatpush2.msra.mxu0 0.0
        %1657 = vmatprep.subr.mxu0 0.0
        %1658 = vmatpush2.msra.mxu0 0.0
        %1659 = vmatprep.subr.mxu0 0.0
        %1660 = vmatpush2.msra.mxu0 0.0
        %1661 = vmatprep.subr.mxu0 0.0
        %1662 = vmatpush2.msra.mxu0 0.0
        %1663 = vmatprep.subr.mxu0 0.0
        %1664 = vmatpush2.msra.mxu0 0.0
        %1665 = vmatprep.subr.mxu0 0.0
        %1666 = vmatpush2.msra.mxu0 0.0
        %1667 = vmatprep.subr.mxu0 0.0
        %1668 = vmatpush2.msra.mxu0 0.0
        %1669 = vmatprep.mubr.f32.mxu0 0.0
        %1670 = vmatmul.mubr.f32.gmra.mxu0 %v834
        %v1671 = vpop.f32.mrf.mxu0
        %v1672 = vadd.f32 0.0, %v1671
        %v1673 = vpop.f32.mrf.mxu0
        %v1674 = vadd.f32 0.0, %v1673
        %1675 = vdwg.mxu0
        %v1676 = vsub.f32 %v1601, %v1672
        %v1677 = vsub.f32 %v1602, %v1674
        %v1679 = vlaneseq
        %v1680 = vshrl.u32 %v1679, 7
        %v1681 = vsub.s32 0, %v1680
        %v1682 = vrot.slane %v505, %v1681
        %v1683 = vlaneseq
        %v1684 = vshrl.u32 %v1683, 7
        %v1685 = vsub.s32 1, %v1684
        %v1686 = vrot.slane %v505, %v1685
        %v1689 = vmul.f32 %v1676, %v1682
        %v1690 = vmul.f32 %v1677, %v1686
        %v1692 = vlaneseq
        %v1693 = vshrl.u32 %v1692, 7
        %v1694 = vsub.s32 0, %v1693
        %v1695 = vrot.slane %v1094, %v1694
        %v1696 = vlaneseq
        %v1697 = vshrl.u32 %v1696, 7
        %v1698 = vsub.s32 1, %v1697
        %v1699 = vrot.slane %v1094, %v1698
        %v1702 = vsel %vm534, %v1695, 0.0
        %v1703 = vsel %vm534, %v1699, 0.0
        %v1704 = vadd.f32 %v1702, %v1703
        %1705 = vadd.xlane.f32.xlu0 %v1704
        %v1706 = vpop.xlane.xlu0 %1705
        %v1707 = vstv %s493
        %v1708 = vmul.f32 %v1706, %v1707
        %vm1709 = vcmask 0
        %1710 = vst.msk [vmem:[%s473] sm:$0x1] %vm1709, %v1708
        %v1712 = vlaneseq
        %v1713 = vshrl.u32 %v1712, 7
        %v1714 = vsub.s32 0, %v1713
        %v1715 = vrot.slane %v1359, %v1714
        %v1716 = vlaneseq
        %v1717 = vshrl.u32 %v1716, 7
        %v1718 = vsub.s32 1, %v1717
        %v1719 = vrot.slane %v1359, %v1718
        %v1722 = vsel %vm534, %v1715, 0.0
        %v1723 = vsel %vm534, %v1719, 0.0
        %v1724 = vadd.f32 %v1722, %v1723
        %1725 = vadd.xlane.f32.xlu0 %v1724
        %v1726 = vpop.xlane.xlu0 %1725
        %v1727 = vstv %s494
        %v1728 = vmul.f32 %v1726, %v1727
        %1729 = vst.msk [vmem:[%s478] sm:$0x1] %vm1709, %v1728
        %v1730 = vsel %vm534, %v1689, 0.0
        %v1731 = vsel %vm534, %v1690, 0.0
        %v1732 = vadd.f32 %v1730, %v1731
        %1733 = vadd.xlane.f32.xlu0 %v1732
        %v1734 = vpop.xlane.xlu0 %1733
        %v1735 = vstv %s496
        %v1736 = vmul.f32 %v1734, %v1735
        %1737 = vst.msk [vmem:[%s483] sm:$0x1] %vm1709, %v1736
        %s1738 = sadd.s32 %s27, %s28
        %p1739 = scmp.lt.s32.totalorder %s1738, 1
        %s1740 = scalar_select %p1739, %s1738, 1
        %s1741 = scalar_lea.vmem %s7, %s1740
        %s1742 = sadd.s32 %s27, %s28
        %p1743 = scmp.lt.s32.totalorder %s1742, 1
        %s1744 = scalar_select %p1743, %s1742, 1
        %s1745 = scalar_lea.vmem %s8, %s1744
        %s1746 = sadd.s32 %s27, %s28
        %p1747 = scmp.lt.s32.totalorder %s1746, 1
        %s1748 = scalar_select %p1747, %s1746, 1
        %s1749 = scalar_lea.vmem %s9, %s1748
        // Predicated region
        $region57: #{forward_train.1} parent=47 // pred_check
          %p1750 = pneg %p223
        $region58: #{forward_train.1} parent=47 // pred_check_branch
          %1752 = sbr.rel (%p1750) target = $region60
        $region59: #{forward_train.1} parent=47 // pred_region
          %s1753 = sadd.s32 %s27, %s28
        $region60: #{forward_train.1} parent=47 // pred_fallthru
          _
        // Predicated region
        $region61: #{forward_train.1} parent=47 // pred_check
          %p1754 = pneg %p251
        $region62: #{forward_train.1} parent=47 // pred_check_branch
          %1756 = sbr.rel (%p1754) target = $region64
        $region63: #{forward_train.1} parent=47 // pred_region
          %s1757 = sadd.s32 %s27, %s28
        $region64: #{forward_train.1} parent=47 // pred_fallthru
          _
        // Predicated region
        $region65: #{forward_train.1} parent=47 // pred_check
          %p1758 = pneg %p279
        $region66: #{forward_train.1} parent=47 // pred_check_branch
          %1760 = sbr.rel (%p1758) target = $region68
        $region67: #{forward_train.1} parent=47 // pred_region
          %s1761 = sadd.s32 %s27, %s28
        $region68: #{forward_train.1} parent=47 // pred_fallthru
          _
      $region48: #{forward_train.1} parent=5 // pred_fallthru
        _
      %p1762 = scmp.le.s32.totalorder 2, %s18
      // Predicated region
      $region69: #{forward_train.1} parent=5 // pred_check
        %p1763 = pneg %p1762
      $region70: #{forward_train.1} parent=5 // pred_check_branch
        %1765 = sbr.rel (%p1763) target = $region72
      $region71: #{forward_train.1} parent=5 // pred_region
        %s1766 = ssub.s32 %s18, 2
        // Predicated region
        $region73: #{forward_train.1} parent=71 // pred_check
          %p1767 = pneg %p229
        $region74: #{forward_train.1} parent=71 // pred_check_branch
          %1769 = sbr.rel (%p1767) target = $region76
        $region75: #{forward_train.1} parent=71 // pred_region
          %s1770 = sadd.s32 %s29, %s30
          %p1771 = scmp.lt.s32.totalorder %s1770, 1
          %s1772 = scalar_select %p1771, %s1770, 1
          %s1773 = scalar_lea.vmem %s7, %s1772
        $region76: #{forward_train.1} parent=71 // pred_fallthru
          _
        // Predicated region
        $region77: #{forward_train.1} parent=71 // pred_check
          %p1774 = pneg %p257
        $region78: #{forward_train.1} parent=71 // pred_check_branch
          %1776 = sbr.rel (%p1774) target = $region80
        $region79: #{forward_train.1} parent=71 // pred_region
          %s1777 = sadd.s32 %s29, %s30
          %p1778 = scmp.lt.s32.totalorder %s1777, 1
          %s1779 = scalar_select %p1778, %s1777, 1
          %s1780 = scalar_lea.vmem %s8, %s1779
        $region80: #{forward_train.1} parent=71 // pred_fallthru
          _
        // Predicated region
        $region81: #{forward_train.1} parent=71 // pred_check
          %p1781 = pneg %p285
        $region82: #{forward_train.1} parent=71 // pred_check_branch
          %1783 = sbr.rel (%p1781) target = $region84
        $region83: #{forward_train.1} parent=71 // pred_region
          %s1784 = sadd.s32 %s29, %s30
          %p1785 = scmp.lt.s32.totalorder %s1784, 1
          %s1786 = scalar_select %p1785, %s1784, 1
          %s1787 = scalar_lea.vmem %s9, %s1786
        $region84: #{forward_train.1} parent=71 // pred_fallthru
          _
      $region72: #{forward_train.1} parent=5 // pred_fallthru
        _
    $region6: #{forward_train.1} parent=1 // loop_footer
      %s22 = sadd.s32 1, %s18
    $region7: #{forward_train.1} parent=1 // loop_footer_branch
      %17 = sbr.rel target = $region3
    $region8: #{forward_train.1} parent=1 // loop_exit
      _
    %1788 = vsyncpa [#allocation3], 1
    %s1789 = scalar_lea.sflag [#allocation3], 1
    %1790 = vsyncpa %s1789, 1
    %1791 = vsyncpa [#allocation5], 1

</llo_original>
